<compile_context>
chip_gen: v7x
topology: tpu7x:2x2x1
jax: 0.10.0
libtpu: 0.0.40
codegen_flags: <defaults>
</compile_context>

<pallas_src>
import jax
import jax.numpy as jnp
from jax.experimental import pallas as pl
from jax.experimental.pallas import tpu as pltpu

MIN_LOGVAR = -5.0
MAX_LOGVAR = -1.0


def _swish(x):
    return x * jax.nn.sigmoid(x)


def ensemble_dynamics_kernel(s_ref, a_ref,
                             w1s_ref, w1a_ref, b1_ref,
                             w2_ref, b2_ref,
                             w3_ref, b3_ref,
                             w4_ref, b4_ref,
                             out_ref):
    e_per_block = s_ref.shape[0]
    batch = s_ref.shape[1]
    out2 = w4_ref.shape[-1]
    out_size = out2 // 2

    # Lane mask selecting the logvar half of the combined output (hoisted out
    # of the ensemble loop).
    col = jax.lax.broadcasted_iota(jnp.int32, (batch, out2), 1)
    is_logvar = col >= out_size

    # E is tiny and static -> unrolled Python loop inside one grid step.
    for e in range(e_per_block):
        s = s_ref[e]                                   # (B, state_dim)
        a = a_ref[e]                                   # (B, action_dim)

        # Layer 1: folded concat -> two small dots on the MXU.
        h = (jnp.dot(s, w1s_ref[e], preferred_element_type=jnp.float32)
             + jnp.dot(a, w1a_ref[e], preferred_element_type=jnp.float32)
             + b1_ref[e])
        h = _swish(h)
        h = _swish(jnp.dot(h, w2_ref[e], preferred_element_type=jnp.float32) + b2_ref[e])
        h = _swish(jnp.dot(h, w3_ref[e], preferred_element_type=jnp.float32) + b3_ref[e])
        op = jnp.dot(h, w4_ref[e], preferred_element_type=jnp.float32) + b4_ref[e]

        # Soft-clamped logvar -> var, applied to the full tile then masked into
        # the upper half (bounded in [-5,-1] so exp is always finite).
        logvar = MIN_LOGVAR + (MAX_LOGVAR - MIN_LOGVAR) * jax.nn.sigmoid(op)
        var = jnp.exp(logvar)
        out_ref[e] = jnp.where(is_logvar, var, op).astype(out_ref.dtype)


def ensemble_dynamics_forward(states, actions, params, *, num_blocks=1):
    """states: (E, B, state_dim), actions: (E, B, action_dim)
    -> (mean, var), each (E, B, out_size).

    num_blocks: grid steps over the ensemble axis. 1 (fully collapsed) is best
    on v5e/v6e; 2 lets v7x's two TensorCores each take half the ensemble.
    """
    E, B, state_dim = states.shape
    _, _, action_dim = actions.shape
    w1, b1, w2, b2, w3, b3, w4, b4 = params
    hidden = w1.shape[-1]
    out2 = w4.shape[-1]
    assert out2 % 2 == 0, "final layer width must be even (mean | logvar)"
    out_size = out2 // 2
    assert E % num_blocks == 0
    eb = E // num_blocks

    # Static, free slice of a tiny weight: fold the concat into two dots.
    w1_s = w1[:, :state_dim, :]
    w1_a = w1[:, state_dim:, :]

    def full_block(shape):
        # Block covers the full last two dims ("full array dims" exception to
        # the (8,128) rule); ensemble axis tiled by the grid.
        return pl.BlockSpec((eb,) + shape[1:], lambda g: (g, 0, 0))

    grid_spec = pltpu.PrefetchScalarGridSpec(
        num_scalar_prefetch=0,
        grid=(num_blocks,),
        in_specs=[
            full_block(states.shape), full_block(actions.shape),
            full_block(w1_s.shape), full_block(w1_a.shape), full_block(b1.shape),
            full_block(w2.shape), full_block(b2.shape),
            full_block(w3.shape), full_block(b3.shape),
            full_block(w4.shape), full_block(b4.shape),
        ],
        out_specs=pl.BlockSpec((eb, B, out2), lambda g: (g, 0, 0)),
    )

    in_size = state_dim + action_dim
    flops = 2 * E * B * (in_size * hidden + 2 * hidden * hidden + hidden * out2)
    transcendentals = E * B * (3 * hidden + 2 * out2)  # sigmoids + exps
    bytes_accessed = 4 * (
        states.size + actions.size + w1.size + b1.size + w2.size + b2.size
        + w3.size + b3.size + w4.size + b4.size + E * B * out2)

    out = pl.pallas_call(
        ensemble_dynamics_kernel,
        out_shape=jax.ShapeDtypeStruct((E, B, out2), jnp.float32),
        grid_spec=grid_spec,
        compiler_params=pltpu.CompilerParams(
            dimension_semantics=("parallel",)),
        cost_estimate=pl.CostEstimate(
            flops=flops,
            transcendentals=transcendentals,
            bytes_accessed=bytes_accessed),
    )(states, actions, w1_s, w1_a, b1, w2, b2, w3, b3, w4, b4)

    # Free XLA-side slice of the combined output.
    return out[:, :, :out_size], out[:, :, out_size:]


def init_params(key, in_size, hidden_size, out_size, ensemble_size):
    """Deterministic synthetic init mirroring EnsembleLinearLayer shapes:
    weight (E, in, out), bias (E, 1, out)."""
    def xavier_uniform(k, e, fan_in, fan_out):
        bound = jnp.sqrt(6.0 / (fan_in + fan_out))
        return jax.random.uniform(k, (e, fan_in, fan_out), jnp.float32, -bound, bound)

    def xavier_normal(k, e, fan_in, fan_out):
        std = jnp.sqrt(2.0 / (fan_in + fan_out))
        return std * jax.random.normal(k, (e, fan_in, fan_out), jnp.float32)

    ks = jax.random.split(key, 4)
    w1 = xavier_uniform(ks[0], ensemble_size, in_size, hidden_size)
    w2 = xavier_uniform(ks[1], ensemble_size, hidden_size, hidden_size)
    w3 = xavier_uniform(ks[2], ensemble_size, hidden_size, hidden_size)
    w4 = xavier_normal(ks[3], ensemble_size, hidden_size, out_size * 2)
    b1 = jnp.zeros((ensemble_size, 1, hidden_size), jnp.float32)
    b2 = jnp.zeros((ensemble_size, 1, hidden_size), jnp.float32)
    b3 = jnp.zeros((ensemble_size, 1, hidden_size), jnp.float32)
    b4 = jnp.zeros((ensemble_size, 1, out_size * 2), jnp.float32)
    return (w1, b1, w2, b2, w3, b3, w4, b4)


def reference_forward(states, actions, params):
    w1, b1, w2, b2, w3, b3, w4, b4 = params
    x = jnp.concatenate([states, actions], axis=2)
    h = _swish(jnp.einsum('ebi,eio->ebo', x, w1) + b1)
    h = _swish(jnp.einsum('ebi,eio->ebo', h, w2) + b2)
    h = _swish(jnp.einsum('ebi,eio->ebo', h, w3) + b3)
    op = jnp.einsum('ebi,eio->ebo', h, w4) + b4
    out_size = op.shape[-1] // 2
    mean = op[:, :, :out_size]
    logvar = jax.nn.sigmoid(op[:, :, out_size:])
    logvar = MIN_LOGVAR + (MAX_LOGVAR - MIN_LOGVAR) * logvar
    return mean, jnp.exp(logvar)


if __name__ == "__main__":
    # Small shapes consistent with the module's forward:
    # states (E, B, state_dim), actions (E, B, action_dim)
    ensemble_size = 4
    batch = 8
    state_dim = 16     # == out_size
    action_dim = 16
    hidden_size = 32
    in_size = state_dim + action_dim
    out_size = state_dim

    key = jax.random.PRNGKey(0)
    k_s, k_a, k_p = jax.random.split(key, 3)
    states = jax.random.normal(k_s, (ensemble_size, batch, state_dim), jnp.float32)
    actions = jax.random.normal(k_a, (ensemble_size, batch, action_dim), jnp.float32)
    params = init_params(k_p, in_size, hidden_size, out_size, ensemble_size)

    # num_blocks=1: fully collapsed grid (best on v5e/v6e single-TC chips).
    # TODO(synk): set num_blocks=2 on v7x so each TensorCore takes half the ensemble.
    mean, var = ensemble_dynamics_forward(states, actions, params, num_blocks=1)
    jax.block_until_ready((mean, var))

    ref_mean, ref_var = reference_forward(states, actions, params)
    assert jnp.allclose(mean, ref_mean, atol=1e-5, rtol=1e-5)
    assert jnp.allclose(var, ref_var, atol=1e-5, rtol=1e-5)

    print("KERNEL_OK")
</pallas_src>

<mosaic_0001>
module attributes {stable_mosaic.version = 11 : i64} {
  func.func @ensemble_dynamics_kernel(%arg0: i32, %arg1: memref<4x8x16xf32, #tpu.memory_space<vmem>>, %arg2: memref<4x8x16xf32, #tpu.memory_space<vmem>>, %arg3: memref<4x16x32xf32, #tpu.memory_space<vmem>>, %arg4: memref<4x16x32xf32, #tpu.memory_space<vmem>>, %arg5: memref<4x1x32xf32, #tpu.memory_space<vmem>>, %arg6: memref<4x32x32xf32, #tpu.memory_space<vmem>>, %arg7: memref<4x1x32xf32, #tpu.memory_space<vmem>>, %arg8: memref<4x32x32xf32, #tpu.memory_space<vmem>>, %arg9: memref<4x1x32xf32, #tpu.memory_space<vmem>>, %arg10: memref<4x32x32xf32, #tpu.memory_space<vmem>>, %arg11: memref<4x1x32xf32, #tpu.memory_space<vmem>>, %arg12: memref<4x8x32xf32, #tpu.memory_space<vmem>>) attributes {dimension_semantics = [#tpu.dimension_semantics<parallel>], iteration_bounds = array<i64: 1>, scalar_prefetch = 0 : i64, scratch_operands = 0 : i64, tpu.core_type = #tpu.core_type<tc>, window_params = [{transform_indices = @transform_0, window_bounds = array<i64: 4, 8, 16>}, {transform_indices = @transform_1, window_bounds = array<i64: 4, 8, 16>}, {transform_indices = @transform_2, window_bounds = array<i64: 4, 16, 32>}, {transform_indices = @transform_3, window_bounds = array<i64: 4, 16, 32>}, {transform_indices = @transform_4, window_bounds = array<i64: 4, 1, 32>}, {transform_indices = @transform_5, window_bounds = array<i64: 4, 32, 32>}, {transform_indices = @transform_6, window_bounds = array<i64: 4, 1, 32>}, {transform_indices = @transform_7, window_bounds = array<i64: 4, 32, 32>}, {transform_indices = @transform_8, window_bounds = array<i64: 4, 1, 32>}, {transform_indices = @transform_9, window_bounds = array<i64: 4, 32, 32>}, {transform_indices = @transform_10, window_bounds = array<i64: 4, 1, 32>}, {transform_indices = @transform_11, window_bounds = array<i64: 4, 8, 32>}]} {
    %0 = tpu.iota {dimensions = array<i32: 1>} : vector<8x32xi32>
    %c16_i32 = arith.constant 16 : i32
    %1 = vector.broadcast %c16_i32 : i32 to vector<8x32xi32>
    %2 = arith.cmpi sge, %0, %1 : vector<8x32xi32>
    %c0 = arith.constant 0 : index
    %c0_0 = arith.constant 0 : index
    %c0_1 = arith.constant 0 : index
    %3 = vector.load %arg1[%c0, %c0_0, %c0_1] : memref<4x8x16xf32, #tpu.memory_space<vmem>>, vector<1x8x16xf32>
    %4 = vector.shape_cast %3 : vector<1x8x16xf32> to vector<8x16xf32>
    %c0_2 = arith.constant 0 : index
    %c0_3 = arith.constant 0 : index
    %c0_4 = arith.constant 0 : index
    %5 = vector.load %arg2[%c0_2, %c0_3, %c0_4] : memref<4x8x16xf32, #tpu.memory_space<vmem>>, vector<1x8x16xf32>
    %6 = vector.shape_cast %5 : vector<1x8x16xf32> to vector<8x16xf32>
    %c0_5 = arith.constant 0 : index
    %c0_6 = arith.constant 0 : index
    %c0_7 = arith.constant 0 : index
    %7 = vector.load %arg3[%c0_5, %c0_6, %c0_7] : memref<4x16x32xf32, #tpu.memory_space<vmem>>, vector<1x16x32xf32>
    %8 = vector.shape_cast %7 : vector<1x16x32xf32> to vector<16x32xf32>
    %cst = arith.constant dense<0.000000e+00> : vector<8x32xf32>
    %9 = tpu.matmul %4, %8, %cst {dimension_numbers = #tpu.dot_dimension_numbers<[1], [0], [0], [1], [0, 0, 1, 1], [], []>} : vector<8x16xf32>, vector<16x32xf32>, vector<8x32xf32> -> vector<8x32xf32>
    %c0_8 = arith.constant 0 : index
    %c0_9 = arith.constant 0 : index
    %c0_10 = arith.constant 0 : index
    %10 = vector.load %arg4[%c0_8, %c0_9, %c0_10] : memref<4x16x32xf32, #tpu.memory_space<vmem>>, vector<1x16x32xf32>
    %11 = vector.shape_cast %10 : vector<1x16x32xf32> to vector<16x32xf32>
    %cst_11 = arith.constant dense<0.000000e+00> : vector<8x32xf32>
    %12 = tpu.matmul %6, %11, %cst_11 {dimension_numbers = #tpu.dot_dimension_numbers<[1], [0], [0], [1], [0, 0, 1, 1], [], []>} : vector<8x16xf32>, vector<16x32xf32>, vector<8x32xf32> -> vector<8x32xf32>
    %13 = arith.addf %9, %12 : vector<8x32xf32>
    %c0_12 = arith.constant 0 : index
    %c0_13 = arith.constant 0 : index
    %c0_14 = arith.constant 0 : index
    %14 = vector.load %arg5[%c0_12, %c0_13, %c0_14] : memref<4x1x32xf32, #tpu.memory_space<vmem>>, vector<1x1x32xf32>
    %15 = vector.shape_cast %14 : vector<1x1x32xf32> to vector<1x32xf32>
    %16 = vector.broadcast %15 : vector<1x32xf32> to vector<8x32xf32>
    %17 = arith.addf %13, %16 : vector<8x32xf32>
    %18 = arith.negf %17 : vector<8x32xf32>
    %19 = math.exp %18 : vector<8x32xf32>
    %cst_15 = arith.constant 1.000000e+00 : f32
    %20 = vector.broadcast %cst_15 : f32 to vector<8x32xf32>
    %21 = arith.addf %20, %19 : vector<8x32xf32>
    %22 = arith.divf %20, %21 : vector<8x32xf32>
    %23 = arith.mulf %17, %22 : vector<8x32xf32>
    %c0_16 = arith.constant 0 : index
    %c0_17 = arith.constant 0 : index
    %c0_18 = arith.constant 0 : index
    %24 = vector.load %arg6[%c0_16, %c0_17, %c0_18] : memref<4x32x32xf32, #tpu.memory_space<vmem>>, vector<1x32x32xf32>
    %25 = vector.shape_cast %24 : vector<1x32x32xf32> to vector<32x32xf32>
    %cst_19 = arith.constant dense<0.000000e+00> : vector<8x32xf32>
    %26 = tpu.matmul %23, %25, %cst_19 {dimension_numbers = #tpu.dot_dimension_numbers<[1], [0], [0], [1], [0, 0, 1, 1], [], []>} : vector<8x32xf32>, vector<32x32xf32>, vector<8x32xf32> -> vector<8x32xf32>
    %c0_20 = arith.constant 0 : index
    %c0_21 = arith.constant 0 : index
    %c0_22 = arith.constant 0 : index
    %27 = vector.load %arg7[%c0_20, %c0_21, %c0_22] : memref<4x1x32xf32, #tpu.memory_space<vmem>>, vector<1x1x32xf32>
    %28 = vector.shape_cast %27 : vector<1x1x32xf32> to vector<1x32xf32>
    %29 = vector.broadcast %28 : vector<1x32xf32> to vector<8x32xf32>
    %30 = arith.addf %26, %29 : vector<8x32xf32>
    %31 = arith.negf %30 : vector<8x32xf32>
    %32 = math.exp %31 : vector<8x32xf32>
    %cst_23 = arith.constant 1.000000e+00 : f32
    %33 = vector.broadcast %cst_23 : f32 to vector<8x32xf32>
    %34 = arith.addf %33, %32 : vector<8x32xf32>
    %35 = arith.divf %33, %34 : vector<8x32xf32>
    %36 = arith.mulf %30, %35 : vector<8x32xf32>
    %c0_24 = arith.constant 0 : index
    %c0_25 = arith.constant 0 : index
    %c0_26 = arith.constant 0 : index
    %37 = vector.load %arg8[%c0_24, %c0_25, %c0_26] : memref<4x32x32xf32, #tpu.memory_space<vmem>>, vector<1x32x32xf32>
    %38 = vector.shape_cast %37 : vector<1x32x32xf32> to vector<32x32xf32>
    %cst_27 = arith.constant dense<0.000000e+00> : vector<8x32xf32>
    %39 = tpu.matmul %36, %38, %cst_27 {dimension_numbers = #tpu.dot_dimension_numbers<[1], [0], [0], [1], [0, 0, 1, 1], [], []>} : vector<8x32xf32>, vector<32x32xf32>, vector<8x32xf32> -> vector<8x32xf32>
    %c0_28 = arith.constant 0 : index
    %c0_29 = arith.constant 0 : index
    %c0_30 = arith.constant 0 : index
    %40 = vector.load %arg9[%c0_28, %c0_29, %c0_30] : memref<4x1x32xf32, #tpu.memory_space<vmem>>, vector<1x1x32xf32>
    %41 = vector.shape_cast %40 : vector<1x1x32xf32> to vector<1x32xf32>
    %42 = vector.broadcast %41 : vector<1x32xf32> to vector<8x32xf32>
    %43 = arith.addf %39, %42 : vector<8x32xf32>
    %44 = arith.negf %43 : vector<8x32xf32>
    %45 = math.exp %44 : vector<8x32xf32>
    %cst_31 = arith.constant 1.000000e+00 : f32
    %46 = vector.broadcast %cst_31 : f32 to vector<8x32xf32>
    %47 = arith.addf %46, %45 : vector<8x32xf32>
    %48 = arith.divf %46, %47 : vector<8x32xf32>
    %49 = arith.mulf %43, %48 : vector<8x32xf32>
    %c0_32 = arith.constant 0 : index
    %c0_33 = arith.constant 0 : index
    %c0_34 = arith.constant 0 : index
    %50 = vector.load %arg10[%c0_32, %c0_33, %c0_34] : memref<4x32x32xf32, #tpu.memory_space<vmem>>, vector<1x32x32xf32>
    %51 = vector.shape_cast %50 : vector<1x32x32xf32> to vector<32x32xf32>
    %cst_35 = arith.constant dense<0.000000e+00> : vector<8x32xf32>
    %52 = tpu.matmul %49, %51, %cst_35 {dimension_numbers = #tpu.dot_dimension_numbers<[1], [0], [0], [1], [0, 0, 1, 1], [], []>} : vector<8x32xf32>, vector<32x32xf32>, vector<8x32xf32> -> vector<8x32xf32>
    %c0_36 = arith.constant 0 : index
    %c0_37 = arith.constant 0 : index
    %c0_38 = arith.constant 0 : index
    %53 = vector.load %arg11[%c0_36, %c0_37, %c0_38] : memref<4x1x32xf32, #tpu.memory_space<vmem>>, vector<1x1x32xf32>
    %54 = vector.shape_cast %53 : vector<1x1x32xf32> to vector<1x32xf32>
    %55 = vector.broadcast %54 : vector<1x32xf32> to vector<8x32xf32>
    %56 = arith.addf %52, %55 : vector<8x32xf32>
    %57 = arith.negf %56 : vector<8x32xf32>
    %58 = math.exp %57 : vector<8x32xf32>
    %cst_39 = arith.constant 1.000000e+00 : f32
    %59 = vector.broadcast %cst_39 : f32 to vector<8x32xf32>
    %60 = arith.addf %59, %58 : vector<8x32xf32>
    %61 = arith.divf %59, %60 : vector<8x32xf32>
    %cst_40 = arith.constant 4.000000e+00 : f32
    %62 = vector.broadcast %cst_40 : f32 to vector<8x32xf32>
    %63 = arith.mulf %62, %61 : vector<8x32xf32>
    %cst_41 = arith.constant -5.000000e+00 : f32
    %64 = vector.broadcast %cst_41 : f32 to vector<8x32xf32>
    %65 = arith.addf %64, %63 : vector<8x32xf32>
    %66 = math.exp %65 : vector<8x32xf32>
    %67 = arith.select %2, %66, %56 : vector<8x32xi1>, vector<8x32xf32>
    %c0_42 = arith.constant 0 : index
    %c0_43 = arith.constant 0 : index
    %c0_44 = arith.constant 0 : index
    %68 = vector.load %arg12[%c0_42, %c0_43, %c0_44] : memref<4x8x32xf32, #tpu.memory_space<vmem>>, vector<1x8x32xf32>
    %69 = vector.shape_cast %68 : vector<1x8x32xf32> to vector<8x32xf32>
    %70 = vector.shape_cast %67 : vector<8x32xf32> to vector<1x8x32xf32>
    tpu.vector_store %arg12[%c0_42, %c0_43, %c0_44], %70 {strides = array<i32>} : memref<4x8x32xf32, #tpu.memory_space<vmem>>, vector<1x8x32xf32>,
    %c1 = arith.constant 1 : index
    %c0_45 = arith.constant 0 : index
    %c0_46 = arith.constant 0 : index
    %71 = vector.load %arg1[%c1, %c0_45, %c0_46] : memref<4x8x16xf32, #tpu.memory_space<vmem>>, vector<1x8x16xf32>
    %72 = vector.shape_cast %71 : vector<1x8x16xf32> to vector<8x16xf32>
    %c1_47 = arith.constant 1 : index
    %c0_48 = arith.constant 0 : index
    %c0_49 = arith.constant 0 : index
    %73 = vector.load %arg2[%c1_47, %c0_48, %c0_49] : memref<4x8x16xf32, #tpu.memory_space<vmem>>, vector<1x8x16xf32>
    %74 = vector.shape_cast %73 : vector<1x8x16xf32> to vector<8x16xf32>
    %c1_50 = arith.constant 1 : index
    %c0_51 = arith.constant 0 : index
    %c0_52 = arith.constant 0 : index
    %75 = vector.load %arg3[%c1_50, %c0_51, %c0_52] : memref<4x16x32xf32, #tpu.memory_space<vmem>>, vector<1x16x32xf32>
    %76 = vector.shape_cast %75 : vector<1x16x32xf32> to vector<16x32xf32>
    %cst_53 = arith.constant dense<0.000000e+00> : vector<8x32xf32>
    %77 = tpu.matmul %72, %76, %cst_53 {dimension_numbers = #tpu.dot_dimension_numbers<[1], [0], [0], [1], [0, 0, 1, 1], [], []>} : vector<8x16xf32>, vector<16x32xf32>, vector<8x32xf32> -> vector<8x32xf32>
    %c1_54 = arith.constant 1 : index
    %c0_55 = arith.constant 0 : index
    %c0_56 = arith.constant 0 : index
    %78 = vector.load %arg4[%c1_54, %c0_55, %c0_56] : memref<4x16x32xf32, #tpu.memory_space<vmem>>, vector<1x16x32xf32>
    %79 = vector.shape_cast %78 : vector<1x16x32xf32> to vector<16x32xf32>
    %cst_57 = arith.constant dense<0.000000e+00> : vector<8x32xf32>
    %80 = tpu.matmul %74, %79, %cst_57 {dimension_numbers = #tpu.dot_dimension_numbers<[1], [0], [0], [1], [0, 0, 1, 1], [], []>} : vector<8x16xf32>, vector<16x32xf32>, vector<8x32xf32> -> vector<8x32xf32>
    %81 = arith.addf %77, %80 : vector<8x32xf32>
    %c1_58 = arith.constant 1 : index
    %c0_59 = arith.constant 0 : index
    %c0_60 = arith.constant 0 : index
    %82 = vector.load %arg5[%c1_58, %c0_59, %c0_60] : memref<4x1x32xf32, #tpu.memory_space<vmem>>, vector<1x1x32xf32>
    %83 = vector.shape_cast %82 : vector<1x1x32xf32> to vector<1x32xf32>
    %84 = vector.broadcast %83 : vector<1x32xf32> to vector<8x32xf32>
    %85 = arith.addf %81, %84 : vector<8x32xf32>
    %86 = arith.negf %85 : vector<8x32xf32>
    %87 = math.exp %86 : vector<8x32xf32>
    %cst_61 = arith.constant 1.000000e+00 : f32
    %88 = vector.broadcast %cst_61 : f32 to vector<8x32xf32>
    %89 = arith.addf %88, %87 : vector<8x32xf32>
    %90 = arith.divf %88, %89 : vector<8x32xf32>
    %91 = arith.mulf %85, %90 : vector<8x32xf32>
    %c1_62 = arith.constant 1 : index
    %c0_63 = arith.constant 0 : index
    %c0_64 = arith.constant 0 : index
    %92 = vector.load %arg6[%c1_62, %c0_63, %c0_64] : memref<4x32x32xf32, #tpu.memory_space<vmem>>, vector<1x32x32xf32>
    %93 = vector.shape_cast %92 : vector<1x32x32xf32> to vector<32x32xf32>
    %cst_65 = arith.constant dense<0.000000e+00> : vector<8x32xf32>
    %94 = tpu.matmul %91, %93, %cst_65 {dimension_numbers = #tpu.dot_dimension_numbers<[1], [0], [0], [1], [0, 0, 1, 1], [], []>} : vector<8x32xf32>, vector<32x32xf32>, vector<8x32xf32> -> vector<8x32xf32>
    %c1_66 = arith.constant 1 : index
    %c0_67 = arith.constant 0 : index
    %c0_68 = arith.constant 0 : index
    %95 = vector.load %arg7[%c1_66, %c0_67, %c0_68] : memref<4x1x32xf32, #tpu.memory_space<vmem>>, vector<1x1x32xf32>
    %96 = vector.shape_cast %95 : vector<1x1x32xf32> to vector<1x32xf32>
    %97 = vector.broadcast %96 : vector<1x32xf32> to vector<8x32xf32>
    %98 = arith.addf %94, %97 : vector<8x32xf32>
    %99 = arith.negf %98 : vector<8x32xf32>
    %100 = math.exp %99 : vector<8x32xf32>
    %cst_69 = arith.constant 1.000000e+00 : f32
    %101 = vector.broadcast %cst_69 : f32 to vector<8x32xf32>
    %102 = arith.addf %101, %100 : vector<8x32xf32>
    %103 = arith.divf %101, %102 : vector<8x32xf32>
    %104 = arith.mulf %98, %103 : vector<8x32xf32>
    %c1_70 = arith.constant 1 : index
    %c0_71 = arith.constant 0 : index
    %c0_72 = arith.constant 0 : index
    %105 = vector.load %arg8[%c1_70, %c0_71, %c0_72] : memref<4x32x32xf32, #tpu.memory_space<vmem>>, vector<1x32x32xf32>
    %106 = vector.shape_cast %105 : vector<1x32x32xf32> to vector<32x32xf32>
    %cst_73 = arith.constant dense<0.000000e+00> : vector<8x32xf32>
    %107 = tpu.matmul %104, %106, %cst_73 {dimension_numbers = #tpu.dot_dimension_numbers<[1], [0], [0], [1], [0, 0, 1, 1], [], []>} : vector<8x32xf32>, vector<32x32xf32>, vector<8x32xf32> -> vector<8x32xf32>
    %c1_74 = arith.constant 1 : index
    %c0_75 = arith.constant 0 : index
    %c0_76 = arith.constant 0 : index
    %108 = vector.load %arg9[%c1_74, %c0_75, %c0_76] : memref<4x1x32xf32, #tpu.memory_space<vmem>>, vector<1x1x32xf32>
    %109 = vector.shape_cast %108 : vector<1x1x32xf32> to vector<1x32xf32>
    %110 = vector.broadcast %109 : vector<1x32xf32> to vector<8x32xf32>
    %111 = arith.addf %107, %110 : vector<8x32xf32>
    %112 = arith.negf %111 : vector<8x32xf32>
    %113 = math.exp %112 : vector<8x32xf32>
    %cst_77 = arith.constant 1.000000e+00 : f32
    %114 = vector.broadcast %cst_77 : f32 to vector<8x32xf32>
    %115 = arith.addf %114, %113 : vector<8x32xf32>
    %116 = arith.divf %114, %115 : vector<8x32xf32>
    %117 = arith.mulf %111, %116 : vector<8x32xf32>
    %c1_78 = arith.constant 1 : index
    %c0_79 = arith.constant 0 : index
    %c0_80 = arith.constant 0 : index
    %118 = vector.load %arg10[%c1_78, %c0_79, %c0_80] : memref<4x32x32xf32, #tpu.memory_space<vmem>>, vector<1x32x32xf32>
    %119 = vector.shape_cast %118 : vector<1x32x32xf32> to vector<32x32xf32>
    %cst_81 = arith.constant dense<0.000000e+00> : vector<8x32xf32>
    %120 = tpu.matmul %117, %119, %cst_81 {dimension_numbers = #tpu.dot_dimension_numbers<[1], [0], [0], [1], [0, 0, 1, 1], [], []>} : vector<8x32xf32>, vector<32x32xf32>, vector<8x32xf32> -> vector<8x32xf32>
    %c1_82 = arith.constant 1 : index
    %c0_83 = arith.constant 0 : index
    %c0_84 = arith.constant 0 : index
    %121 = vector.load %arg11[%c1_82, %c0_83, %c0_84] : memref<4x1x32xf32, #tpu.memory_space<vmem>>, vector<1x1x32xf32>
    %122 = vector.shape_cast %121 : vector<1x1x32xf32> to vector<1x32xf32>
    %123 = vector.broadcast %122 : vector<1x32xf32> to vector<8x32xf32>
    %124 = arith.addf %120, %123 : vector<8x32xf32>
    %125 = arith.negf %124 : vector<8x32xf32>
    %126 = math.exp %125 : vector<8x32xf32>
    %cst_85 = arith.constant 1.000000e+00 : f32
    %127 = vector.broadcast %cst_85 : f32 to vector<8x32xf32>
    %128 = arith.addf %127, %126 : vector<8x32xf32>
    %129 = arith.divf %127, %128 : vector<8x32xf32>
    %cst_86 = arith.constant 4.000000e+00 : f32
    %130 = vector.broadcast %cst_86 : f32 to vector<8x32xf32>
    %131 = arith.mulf %130, %129 : vector<8x32xf32>
    %cst_87 = arith.constant -5.000000e+00 : f32
    %132 = vector.broadcast %cst_87 : f32 to vector<8x32xf32>
    %133 = arith.addf %132, %131 : vector<8x32xf32>
    %134 = math.exp %133 : vector<8x32xf32>
    %135 = arith.select %2, %134, %124 : vector<8x32xi1>, vector<8x32xf32>
    %c1_88 = arith.constant 1 : index
    %c0_89 = arith.constant 0 : index
    %c0_90 = arith.constant 0 : index
    %136 = vector.load %arg12[%c1_88, %c0_89, %c0_90] : memref<4x8x32xf32, #tpu.memory_space<vmem>>, vector<1x8x32xf32>
    %137 = vector.shape_cast %136 : vector<1x8x32xf32> to vector<8x32xf32>
    %138 = vector.shape_cast %135 : vector<8x32xf32> to vector<1x8x32xf32>
    tpu.vector_store %arg12[%c1_88, %c0_89, %c0_90], %138 {strides = array<i32>} : memref<4x8x32xf32, #tpu.memory_space<vmem>>, vector<1x8x32xf32>,
    %c2 = arith.constant 2 : index
    %c0_91 = arith.constant 0 : index
    %c0_92 = arith.constant 0 : index
    %139 = vector.load %arg1[%c2, %c0_91, %c0_92] : memref<4x8x16xf32, #tpu.memory_space<vmem>>, vector<1x8x16xf32>
    %140 = vector.shape_cast %139 : vector<1x8x16xf32> to vector<8x16xf32>
    %c2_93 = arith.constant 2 : index
    %c0_94 = arith.constant 0 : index
    %c0_95 = arith.constant 0 : index
    %141 = vector.load %arg2[%c2_93, %c0_94, %c0_95] : memref<4x8x16xf32, #tpu.memory_space<vmem>>, vector<1x8x16xf32>
    %142 = vector.shape_cast %141 : vector<1x8x16xf32> to vector<8x16xf32>
    %c2_96 = arith.constant 2 : index
    %c0_97 = arith.constant 0 : index
    %c0_98 = arith.constant 0 : index
    %143 = vector.load %arg3[%c2_96, %c0_97, %c0_98] : memref<4x16x32xf32, #tpu.memory_space<vmem>>, vector<1x16x32xf32>
    %144 = vector.shape_cast %143 : vector<1x16x32xf32> to vector<16x32xf32>
    %cst_99 = arith.constant dense<0.000000e+00> : vector<8x32xf32>
    %145 = tpu.matmul %140, %144, %cst_99 {dimension_numbers = #tpu.dot_dimension_numbers<[1], [0], [0], [1], [0, 0, 1, 1], [], []>} : vector<8x16xf32>, vector<16x32xf32>, vector<8x32xf32> -> vector<8x32xf32>
    %c2_100 = arith.constant 2 : index
    %c0_101 = arith.constant 0 : index
    %c0_102 = arith.constant 0 : index
    %146 = vector.load %arg4[%c2_100, %c0_101, %c0_102] : memref<4x16x32xf32, #tpu.memory_space<vmem>>, vector<1x16x32xf32>
    %147 = vector.shape_cast %146 : vector<1x16x32xf32> to vector<16x32xf32>
    %cst_103 = arith.constant dense<0.000000e+00> : vector<8x32xf32>
    %148 = tpu.matmul %142, %147, %cst_103 {dimension_numbers = #tpu.dot_dimension_numbers<[1], [0], [0], [1], [0, 0, 1, 1], [], []>} : vector<8x16xf32>, vector<16x32xf32>, vector<8x32xf32> -> vector<8x32xf32>
    %149 = arith.addf %145, %148 : vector<8x32xf32>
    %c2_104 = arith.constant 2 : index
    %c0_105 = arith.constant 0 : index
    %c0_106 = arith.constant 0 : index
    %150 = vector.load %arg5[%c2_104, %c0_105, %c0_106] : memref<4x1x32xf32, #tpu.memory_space<vmem>>, vector<1x1x32xf32>
    %151 = vector.shape_cast %150 : vector<1x1x32xf32> to vector<1x32xf32>
    %152 = vector.broadcast %151 : vector<1x32xf32> to vector<8x32xf32>
    %153 = arith.addf %149, %152 : vector<8x32xf32>
    %154 = arith.negf %153 : vector<8x32xf32>
    %155 = math.exp %154 : vector<8x32xf32>
    %cst_107 = arith.constant 1.000000e+00 : f32
    %156 = vector.broadcast %cst_107 : f32 to vector<8x32xf32>
    %157 = arith.addf %156, %155 : vector<8x32xf32>
    %158 = arith.divf %156, %157 : vector<8x32xf32>
    %159 = arith.mulf %153, %158 : vector<8x32xf32>
    %c2_108 = arith.constant 2 : index
    %c0_109 = arith.constant 0 : index
    %c0_110 = arith.constant 0 : index
    %160 = vector.load %arg6[%c2_108, %c0_109, %c0_110] : memref<4x32x32xf32, #tpu.memory_space<vmem>>, vector<1x32x32xf32>
    %161 = vector.shape_cast %160 : vector<1x32x32xf32> to vector<32x32xf32>
    %cst_111 = arith.constant dense<0.000000e+00> : vector<8x32xf32>
    %162 = tpu.matmul %159, %161, %cst_111 {dimension_numbers = #tpu.dot_dimension_numbers<[1], [0], [0], [1], [0, 0, 1, 1], [], []>} : vector<8x32xf32>, vector<32x32xf32>, vector<8x32xf32> -> vector<8x32xf32>
    %c2_112 = arith.constant 2 : index
    %c0_113 = arith.constant 0 : index
    %c0_114 = arith.constant 0 : index
    %163 = vector.load %arg7[%c2_112, %c0_113, %c0_114] : memref<4x1x32xf32, #tpu.memory_space<vmem>>, vector<1x1x32xf32>
    %164 = vector.shape_cast %163 : vector<1x1x32xf32> to vector<1x32xf32>
    %165 = vector.broadcast %164 : vector<1x32xf32> to vector<8x32xf32>
    %166 = arith.addf %162, %165 : vector<8x32xf32>
    %167 = arith.negf %166 : vector<8x32xf32>
    %168 = math.exp %167 : vector<8x32xf32>
    %cst_115 = arith.constant 1.000000e+00 : f32
    %169 = vector.broadcast %cst_115 : f32 to vector<8x32xf32>
    %170 = arith.addf %169, %168 : vector<8x32xf32>
    %171 = arith.divf %169, %170 : vector<8x32xf32>
    %172 = arith.mulf %166, %171 : vector<8x32xf32>
    %c2_116 = arith.constant 2 : index
    %c0_117 = arith.constant 0 : index
    %c0_118 = arith.constant 0 : index
    %173 = vector.load %arg8[%c2_116, %c0_117, %c0_118] : memref<4x32x32xf32, #tpu.memory_space<vmem>>, vector<1x32x32xf32>
    %174 = vector.shape_cast %173 : vector<1x32x32xf32> to vector<32x32xf32>
    %cst_119 = arith.constant dense<0.000000e+00> : vector<8x32xf32>
    %175 = tpu.matmul %172, %174, %cst_119 {dimension_numbers = #tpu.dot_dimension_numbers<[1], [0], [0], [1], [0, 0, 1, 1], [], []>} : vector<8x32xf32>, vector<32x32xf32>, vector<8x32xf32> -> vector<8x32xf32>
    %c2_120 = arith.constant 2 : index
    %c0_121 = arith.constant 0 : index
    %c0_122 = arith.constant 0 : index
    %176 = vector.load %arg9[%c2_120, %c0_121, %c0_122] : memref<4x1x32xf32, #tpu.memory_space<vmem>>, vector<1x1x32xf32>
    %177 = vector.shape_cast %176 : vector<1x1x32xf32> to vector<1x32xf32>
    %178 = vector.broadcast %177 : vector<1x32xf32> to vector<8x32xf32>
    %179 = arith.addf %175, %178 : vector<8x32xf32>
    %180 = arith.negf %179 : vector<8x32xf32>
    %181 = math.exp %180 : vector<8x32xf32>
    %cst_123 = arith.constant 1.000000e+00 : f32
    %182 = vector.broadcast %cst_123 : f32 to vector<8x32xf32>
    %183 = arith.addf %182, %181 : vector<8x32xf32>
    %184 = arith.divf %182, %183 : vector<8x32xf32>
    %185 = arith.mulf %179, %184 : vector<8x32xf32>
    %c2_124 = arith.constant 2 : index
    %c0_125 = arith.constant 0 : index
    %c0_126 = arith.constant 0 : index
    %186 = vector.load %arg10[%c2_124, %c0_125, %c0_126] : memref<4x32x32xf32, #tpu.memory_space<vmem>>, vector<1x32x32xf32>
    %187 = vector.shape_cast %186 : vector<1x32x32xf32> to vector<32x32xf32>
    %cst_127 = arith.constant dense<0.000000e+00> : vector<8x32xf32>
    %188 = tpu.matmul %185, %187, %cst_127 {dimension_numbers = #tpu.dot_dimension_numbers<[1], [0], [0], [1], [0, 0, 1, 1], [], []>} : vector<8x32xf32>, vector<32x32xf32>, vector<8x32xf32> -> vector<8x32xf32>
    %c2_128 = arith.constant 2 : index
    %c0_129 = arith.constant 0 : index
    %c0_130 = arith.constant 0 : index
    %189 = vector.load %arg11[%c2_128, %c0_129, %c0_130] : memref<4x1x32xf32, #tpu.memory_space<vmem>>, vector<1x1x32xf32>
    %190 = vector.shape_cast %189 : vector<1x1x32xf32> to vector<1x32xf32>
    %191 = vector.broadcast %190 : vector<1x32xf32> to vector<8x32xf32>
    %192 = arith.addf %188, %191 : vector<8x32xf32>
    %193 = arith.negf %192 : vector<8x32xf32>
    %194 = math.exp %193 : vector<8x32xf32>
    %cst_131 = arith.constant 1.000000e+00 : f32
    %195 = vector.broadcast %cst_131 : f32 to vector<8x32xf32>
    %196 = arith.addf %195, %194 : vector<8x32xf32>
    %197 = arith.divf %195, %196 : vector<8x32xf32>
    %cst_132 = arith.constant 4.000000e+00 : f32
    %198 = vector.broadcast %cst_132 : f32 to vector<8x32xf32>
    %199 = arith.mulf %198, %197 : vector<8x32xf32>
    %cst_133 = arith.constant -5.000000e+00 : f32
    %200 = vector.broadcast %cst_133 : f32 to vector<8x32xf32>
    %201 = arith.addf %200, %199 : vector<8x32xf32>
    %202 = math.exp %201 : vector<8x32xf32>
    %203 = arith.select %2, %202, %192 : vector<8x32xi1>, vector<8x32xf32>
    %c2_134 = arith.constant 2 : index
    %c0_135 = arith.constant 0 : index
    %c0_136 = arith.constant 0 : index
    %204 = vector.load %arg12[%c2_134, %c0_135, %c0_136] : memref<4x8x32xf32, #tpu.memory_space<vmem>>, vector<1x8x32xf32>
    %205 = vector.shape_cast %204 : vector<1x8x32xf32> to vector<8x32xf32>
    %206 = vector.shape_cast %203 : vector<8x32xf32> to vector<1x8x32xf32>
    tpu.vector_store %arg12[%c2_134, %c0_135, %c0_136], %206 {strides = array<i32>} : memref<4x8x32xf32, #tpu.memory_space<vmem>>, vector<1x8x32xf32>,
    %c3 = arith.constant 3 : index
    %c0_137 = arith.constant 0 : index
    %c0_138 = arith.constant 0 : index
    %207 = vector.load %arg1[%c3, %c0_137, %c0_138] : memref<4x8x16xf32, #tpu.memory_space<vmem>>, vector<1x8x16xf32>
    %208 = vector.shape_cast %207 : vector<1x8x16xf32> to vector<8x16xf32>
    %c3_139 = arith.constant 3 : index
    %c0_140 = arith.constant 0 : index
    %c0_141 = arith.constant 0 : index
    %209 = vector.load %arg2[%c3_139, %c0_140, %c0_141] : memref<4x8x16xf32, #tpu.memory_space<vmem>>, vector<1x8x16xf32>
    %210 = vector.shape_cast %209 : vector<1x8x16xf32> to vector<8x16xf32>
    %c3_142 = arith.constant 3 : index
    %c0_143 = arith.constant 0 : index
    %c0_144 = arith.constant 0 : index
    %211 = vector.load %arg3[%c3_142, %c0_143, %c0_144] : memref<4x16x32xf32, #tpu.memory_space<vmem>>, vector<1x16x32xf32>
    %212 = vector.shape_cast %211 : vector<1x16x32xf32> to vector<16x32xf32>
    %cst_145 = arith.constant dense<0.000000e+00> : vector<8x32xf32>
    %213 = tpu.matmul %208, %212, %cst_145 {dimension_numbers = #tpu.dot_dimension_numbers<[1], [0], [0], [1], [0, 0, 1, 1], [], []>} : vector<8x16xf32>, vector<16x32xf32>, vector<8x32xf32> -> vector<8x32xf32>
    %c3_146 = arith.constant 3 : index
    %c0_147 = arith.constant 0 : index
    %c0_148 = arith.constant 0 : index
    %214 = vector.load %arg4[%c3_146, %c0_147, %c0_148] : memref<4x16x32xf32, #tpu.memory_space<vmem>>, vector<1x16x32xf32>
    %215 = vector.shape_cast %214 : vector<1x16x32xf32> to vector<16x32xf32>
    %cst_149 = arith.constant dense<0.000000e+00> : vector<8x32xf32>
    %216 = tpu.matmul %210, %215, %cst_149 {dimension_numbers = #tpu.dot_dimension_numbers<[1], [0], [0], [1], [0, 0, 1, 1], [], []>} : vector<8x16xf32>, vector<16x32xf32>, vector<8x32xf32> -> vector<8x32xf32>
    %217 = arith.addf %213, %216 : vector<8x32xf32>
    %c3_150 = arith.constant 3 : index
    %c0_151 = arith.constant 0 : index
    %c0_152 = arith.constant 0 : index
    %218 = vector.load %arg5[%c3_150, %c0_151, %c0_152] : memref<4x1x32xf32, #tpu.memory_space<vmem>>, vector<1x1x32xf32>
    %219 = vector.shape_cast %218 : vector<1x1x32xf32> to vector<1x32xf32>
    %220 = vector.broadcast %219 : vector<1x32xf32> to vector<8x32xf32>
    %221 = arith.addf %217, %220 : vector<8x32xf32>
    %222 = arith.negf %221 : vector<8x32xf32>
    %223 = math.exp %222 : vector<8x32xf32>
    %cst_153 = arith.constant 1.000000e+00 : f32
    %224 = vector.broadcast %cst_153 : f32 to vector<8x32xf32>
    %225 = arith.addf %224, %223 : vector<8x32xf32>
    %226 = arith.divf %224, %225 : vector<8x32xf32>
    %227 = arith.mulf %221, %226 : vector<8x32xf32>
    %c3_154 = arith.constant 3 : index
    %c0_155 = arith.constant 0 : index
    %c0_156 = arith.constant 0 : index
    %228 = vector.load %arg6[%c3_154, %c0_155, %c0_156] : memref<4x32x32xf32, #tpu.memory_space<vmem>>, vector<1x32x32xf32>
    %229 = vector.shape_cast %228 : vector<1x32x32xf32> to vector<32x32xf32>
    %cst_157 = arith.constant dense<0.000000e+00> : vector<8x32xf32>
    %230 = tpu.matmul %227, %229, %cst_157 {dimension_numbers = #tpu.dot_dimension_numbers<[1], [0], [0], [1], [0, 0, 1, 1], [], []>} : vector<8x32xf32>, vector<32x32xf32>, vector<8x32xf32> -> vector<8x32xf32>
    %c3_158 = arith.constant 3 : index
    %c0_159 = arith.constant 0 : index
    %c0_160 = arith.constant 0 : index
    %231 = vector.load %arg7[%c3_158, %c0_159, %c0_160] : memref<4x1x32xf32, #tpu.memory_space<vmem>>, vector<1x1x32xf32>
    %232 = vector.shape_cast %231 : vector<1x1x32xf32> to vector<1x32xf32>
    %233 = vector.broadcast %232 : vector<1x32xf32> to vector<8x32xf32>
    %234 = arith.addf %230, %233 : vector<8x32xf32>
    %235 = arith.negf %234 : vector<8x32xf32>
    %236 = math.exp %235 : vector<8x32xf32>
    %cst_161 = arith.constant 1.000000e+00 : f32
    %237 = vector.broadcast %cst_161 : f32 to vector<8x32xf32>
    %238 = arith.addf %237, %236 : vector<8x32xf32>
    %239 = arith.divf %237, %238 : vector<8x32xf32>
    %240 = arith.mulf %234, %239 : vector<8x32xf32>
    %c3_162 = arith.constant 3 : index
    %c0_163 = arith.constant 0 : index
    %c0_164 = arith.constant 0 : index
    %241 = vector.load %arg8[%c3_162, %c0_163, %c0_164] : memref<4x32x32xf32, #tpu.memory_space<vmem>>, vector<1x32x32xf32>
    %242 = vector.shape_cast %241 : vector<1x32x32xf32> to vector<32x32xf32>
    %cst_165 = arith.constant dense<0.000000e+00> : vector<8x32xf32>
    %243 = tpu.matmul %240, %242, %cst_165 {dimension_numbers = #tpu.dot_dimension_numbers<[1], [0], [0], [1], [0, 0, 1, 1], [], []>} : vector<8x32xf32>, vector<32x32xf32>, vector<8x32xf32> -> vector<8x32xf32>
    %c3_166 = arith.constant 3 : index
    %c0_167 = arith.constant 0 : index
    %c0_168 = arith.constant 0 : index
    %244 = vector.load %arg9[%c3_166, %c0_167, %c0_168] : memref<4x1x32xf32, #tpu.memory_space<vmem>>, vector<1x1x32xf32>
    %245 = vector.shape_cast %244 : vector<1x1x32xf32> to vector<1x32xf32>
    %246 = vector.broadcast %245 : vector<1x32xf32> to vector<8x32xf32>
    %247 = arith.addf %243, %246 : vector<8x32xf32>
    %248 = arith.negf %247 : vector<8x32xf32>
    %249 = math.exp %248 : vector<8x32xf32>
    %cst_169 = arith.constant 1.000000e+00 : f32
    %250 = vector.broadcast %cst_169 : f32 to vector<8x32xf32>
    %251 = arith.addf %250, %249 : vector<8x32xf32>
    %252 = arith.divf %250, %251 : vector<8x32xf32>
    %253 = arith.mulf %247, %252 : vector<8x32xf32>
    %c3_170 = arith.constant 3 : index
    %c0_171 = arith.constant 0 : index
    %c0_172 = arith.constant 0 : index
    %254 = vector.load %arg10[%c3_170, %c0_171, %c0_172] : memref<4x32x32xf32, #tpu.memory_space<vmem>>, vector<1x32x32xf32>
    %255 = vector.shape_cast %254 : vector<1x32x32xf32> to vector<32x32xf32>
    %cst_173 = arith.constant dense<0.000000e+00> : vector<8x32xf32>
    %256 = tpu.matmul %253, %255, %cst_173 {dimension_numbers = #tpu.dot_dimension_numbers<[1], [0], [0], [1], [0, 0, 1, 1], [], []>} : vector<8x32xf32>, vector<32x32xf32>, vector<8x32xf32> -> vector<8x32xf32>
    %c3_174 = arith.constant 3 : index
    %c0_175 = arith.constant 0 : index
    %c0_176 = arith.constant 0 : index
    %257 = vector.load %arg11[%c3_174, %c0_175, %c0_176] : memref<4x1x32xf32, #tpu.memory_space<vmem>>, vector<1x1x32xf32>
    %258 = vector.shape_cast %257 : vector<1x1x32xf32> to vector<1x32xf32>
    %259 = vector.broadcast %258 : vector<1x32xf32> to vector<8x32xf32>
    %260 = arith.addf %256, %259 : vector<8x32xf32>
    %261 = arith.negf %260 : vector<8x32xf32>
    %262 = math.exp %261 : vector<8x32xf32>
    %cst_177 = arith.constant 1.000000e+00 : f32
    %263 = vector.broadcast %cst_177 : f32 to vector<8x32xf32>
    %264 = arith.addf %263, %262 : vector<8x32xf32>
    %265 = arith.divf %263, %264 : vector<8x32xf32>
    %cst_178 = arith.constant 4.000000e+00 : f32
    %266 = vector.broadcast %cst_178 : f32 to vector<8x32xf32>
    %267 = arith.mulf %266, %265 : vector<8x32xf32>
    %cst_179 = arith.constant -5.000000e+00 : f32
    %268 = vector.broadcast %cst_179 : f32 to vector<8x32xf32>
    %269 = arith.addf %268, %267 : vector<8x32xf32>
    %270 = math.exp %269 : vector<8x32xf32>
    %271 = arith.select %2, %270, %260 : vector<8x32xi1>, vector<8x32xf32>
    %c3_180 = arith.constant 3 : index
    %c0_181 = arith.constant 0 : index
    %c0_182 = arith.constant 0 : index
    %272 = vector.load %arg12[%c3_180, %c0_181, %c0_182] : memref<4x8x32xf32, #tpu.memory_space<vmem>>, vector<1x8x32xf32>
    %273 = vector.shape_cast %272 : vector<1x8x32xf32> to vector<8x32xf32>
    %274 = vector.shape_cast %271 : vector<8x32xf32> to vector<1x8x32xf32>
    tpu.vector_store %arg12[%c3_180, %c0_181, %c0_182], %274 {strides = array<i32>} : memref<4x8x32xf32, #tpu.memory_space<vmem>>, vector<1x8x32xf32>,
    return
  }
  func.func @transform_0(%arg0: i32) -> (i32, i32, i32) {
    %c0_i32 = arith.constant 0 : i32
    %c0_i32_0 = arith.constant 0 : i32
    %c0_i32_1 = arith.constant 0 : i32
    return %arg0, %c0_i32, %c0_i32_0 : i32, i32, i32
  }
  func.func @transform_1(%arg0: i32) -> (i32, i32, i32) {
    %c0_i32 = arith.constant 0 : i32
    %c0_i32_0 = arith.constant 0 : i32
    %c0_i32_1 = arith.constant 0 : i32
    return %arg0, %c0_i32, %c0_i32_0 : i32, i32, i32
  }
  func.func @transform_2(%arg0: i32) -> (i32, i32, i32) {
    %c0_i32 = arith.constant 0 : i32
    %c0_i32_0 = arith.constant 0 : i32
    %c0_i32_1 = arith.constant 0 : i32
    return %arg0, %c0_i32, %c0_i32_0 : i32, i32, i32
  }
  func.func @transform_3(%arg0: i32) -> (i32, i32, i32) {
    %c0_i32 = arith.constant 0 : i32
    %c0_i32_0 = arith.constant 0 : i32
    %c0_i32_1 = arith.constant 0 : i32
    return %arg0, %c0_i32, %c0_i32_0 : i32, i32, i32
  }
  func.func @transform_4(%arg0: i32) -> (i32, i32, i32) {
    %c0_i32 = arith.constant 0 : i32
    %c0_i32_0 = arith.constant 0 : i32
    %c0_i32_1 = arith.constant 0 : i32
    return %arg0, %c0_i32, %c0_i32_0 : i32, i32, i32
  }
  func.func @transform_5(%arg0: i32) -> (i32, i32, i32) {
    %c0_i32 = arith.constant 0 : i32
    %c0_i32_0 = arith.constant 0 : i32
    %c0_i32_1 = arith.constant 0 : i32
    return %arg0, %c0_i32, %c0_i32_0 : i32, i32, i32
  }
  func.func @transform_6(%arg0: i32) -> (i32, i32, i32) {
    %c0_i32 = arith.constant 0 : i32
    %c0_i32_0 = arith.constant 0 : i32
    %c0_i32_1 = arith.constant 0 : i32
    return %arg0, %c0_i32, %c0_i32_0 : i32, i32, i32
  }
  func.func @transform_7(%arg0: i32) -> (i32, i32, i32) {
    %c0_i32 = arith.constant 0 : i32
    %c0_i32_0 = arith.constant 0 : i32
    %c0_i32_1 = arith.constant 0 : i32
    return %arg0, %c0_i32, %c0_i32_0 : i32, i32, i32
  }
  func.func @transform_8(%arg0: i32) -> (i32, i32, i32) {
    %c0_i32 = arith.constant 0 : i32
    %c0_i32_0 = arith.constant 0 : i32
    %c0_i32_1 = arith.constant 0 : i32
    return %arg0, %c0_i32, %c0_i32_0 : i32, i32, i32
  }
  func.func @transform_9(%arg0: i32) -> (i32, i32, i32) {
    %c0_i32 = arith.constant 0 : i32
    %c0_i32_0 = arith.constant 0 : i32
    %c0_i32_1 = arith.constant 0 : i32
    return %arg0, %c0_i32, %c0_i32_0 : i32, i32, i32
  }
  func.func @transform_10(%arg0: i32) -> (i32, i32, i32) {
    %c0_i32 = arith.constant 0 : i32
    %c0_i32_0 = arith.constant 0 : i32
    %c0_i32_1 = arith.constant 0 : i32
    return %arg0, %c0_i32, %c0_i32_0 : i32, i32, i32
  }
  func.func @transform_11(%arg0: i32) -> (i32, i32, i32) {
    %c0_i32 = arith.constant 0 : i32
    %c0_i32_0 = arith.constant 0 : i32
    %c0_i32_1 = arith.constant 0 : i32
    return %arg0, %c0_i32, %c0_i32_0 : i32, i32, i32
  }
}

</mosaic_0001>

<llo_original>
// kernel: tpu_custom_call.1
$region0: #{tpu_custom_call.1}
  #allocation0 [shape = 'u32[]', space=smem, size = 0x4, offset = 0x4, fixed_abs, tag = 'smem constant byte address 0x4 - core index']
  #allocation1 [shape = 'u32[144,128]{1,0:T(1,128)}', space=vmem, size = 0x12000, scoped, tag = 'internal scratch']
  %s0 = inlined_call_operand.hbm [shape: f32[4,8,16], index: 0, kind: input, shape index: {}]
  %s1 = inlined_call_operand.hbm [shape: f32[4,8,16], index: 1, kind: input, shape index: {}]
  %s2 = inlined_call_operand.hbm [shape: f32[4,16,32], index: 2, kind: input, shape index: {}]
  %s3 = inlined_call_operand.hbm [shape: f32[4,16,32], index: 3, kind: input, shape index: {}]
  %s4 = inlined_call_operand.vmem [shape: f32[4,1,32], index: 4, kind: input, shape index: {}]
  %s5 = inlined_call_operand.hbm [shape: f32[4,32,32], index: 5, kind: input, shape index: {}]
  %s6 = inlined_call_operand.vmem [shape: f32[4,1,32], index: 6, kind: input, shape index: {}]
  %s7 = inlined_call_operand.hbm [shape: f32[4,32,32], index: 7, kind: input, shape index: {}]
  %s8 = inlined_call_operand.vmem [shape: f32[4,1,32], index: 8, kind: input, shape index: {}]
  %s9 = inlined_call_operand.hbm [shape: f32[4,32,32], index: 9, kind: input, shape index: {}]
  %s10 = inlined_call_operand.vmem [shape: f32[4,1,32], index: 10, kind: input, shape index: {}]
  %s11 = inlined_call_operand.hbm [shape: f32[4,8,32], index: 11, kind: output, shape index: {}]
  %s12 = sld [smem:[#allocation0]]
  $region82: #{tpu_custom_call.1} parent=0
    _
  %s14 = ssub.s32 1, %s12
  %s15 = scalar_select 0, %s14, %s12
  $region1: #{tpu_custom_call.1} parent=0
    #allocation2 [shape = 'u8[16384]{0}', space=vmem, size = 0x4000, scoped, tag = 'input window, operand 0, single buffered']
    #allocation3 [shape = 's32[1]{0}', space=sflag, size = 0x4, scoped, tag = 'scoped memory for tpu_custom_call.1']
    #allocation4 [shape = 's32[1]{0}', space=sflag, size = 0x4, scoped, tag = 'scoped memory for tpu_custom_call.1']
    #allocation5 [shape = 'u8[16384]{0}', space=vmem, size = 0x4000, scoped, tag = 'input window, operand 1, single buffered']
    #allocation6 [shape = 's32[1]{0}', space=sflag, size = 0x4, scoped, tag = 'scoped memory for tpu_custom_call.1']
    #allocation7 [shape = 'u8[32768]{0}', space=vmem, size = 0x8000, scoped, tag = 'input window, operand 2, single buffered']
    #allocation8 [shape = 'u8[32768]{0}', space=vmem, size = 0x8000, scoped, tag = 'input window, operand 3, single buffered']
    #allocation9 [shape = 's32[1]{0}', space=sflag, size = 0x4, scoped, tag = 'scoped memory for tpu_custom_call.1']
    #allocation10 [shape = 'u8[65536]{0}', space=vmem, size = 0x10000, scoped, tag = 'input window, operand 5, single buffered']
    #allocation11 [shape = 'u8[65536]{0}', space=vmem, size = 0x10000, scoped, tag = 'input window, operand 7, single buffered']
    #allocation12 [shape = 's32[1]{0}', space=sflag, size = 0x4, scoped, tag = 'scoped memory for tpu_custom_call.1']
    #allocation13 [shape = 'u8[65536]{0}', space=vmem, size = 0x10000, scoped, tag = 'input window, operand 9, single buffered']
    #allocation14 [shape = 'u8[16384]{0}', space=vmem, size = 0x4000, scoped, tag = 'output window, operand 0, single buffered']
    %16 = vsyncpa [#allocation3], 0
    %17 = vsyncpa [#allocation6], 0
    %18 = vsyncpa [#allocation9], 0
    %19 = vsyncpa [#allocation12], 0
    %20 = vsyncpa [#allocation4], 0
    // Predicated region
    $region2: #{tpu_custom_call.1} parent=1 // pred_check
      _
    $region3: #{tpu_custom_call.1} parent=1 // pred_check_branch
      %22 = sbr.rel (0) target = $region5
    $region4: #{tpu_custom_call.1} parent=1 // pred_region
      %s24 = ssub.s32 512, 512
      %25 = vsyncadd [#allocation3], %s24
      %s26 = sshll.u32 [#allocation2], 4
      %s27 = int_to_ptr.vmem [resolvable:$true] %s26
      %32 = dma.hbm_to_vmem [thread:$0]  %s0, 512, %s27, [#allocation3], 128, 128, 8
    $region5: #{tpu_custom_call.1} parent=1 // pred_fallthru
      _
    // Predicated region
    $region6: #{tpu_custom_call.1} parent=1 // pred_check
      _
    $region7: #{tpu_custom_call.1} parent=1 // pred_check_branch
      %34 = sbr.rel (0) target = $region9
    $region8: #{tpu_custom_call.1} parent=1 // pred_region
      %s36 = ssub.s32 512, 512
      %37 = vsyncadd [#allocation6], %s36
      %s38 = sshll.u32 [#allocation5], 4
      %s39 = int_to_ptr.vmem [resolvable:$true] %s38
      %44 = dma.hbm_to_vmem [thread:$0]  %s1, 512, %s39, [#allocation6], 128, 128, 8
    $region9: #{tpu_custom_call.1} parent=1 // pred_fallthru
      _
    // Predicated region
    $region10: #{tpu_custom_call.1} parent=1 // pred_check
      _
    $region11: #{tpu_custom_call.1} parent=1 // pred_check_branch
      %46 = sbr.rel (0) target = $region13
    $region12: #{tpu_custom_call.1} parent=1 // pred_region
      %s48 = ssub.s32 1024, 1024
      %49 = vsyncadd [#allocation6], %s48
      %s50 = sshll.u32 [#allocation7], 4
      %s51 = int_to_ptr.vmem [resolvable:$true] %s50
      %56 = dma.hbm_to_vmem [thread:$0]  %s2, 1024, %s51, [#allocation6], 128, 128, 8
    $region13: #{tpu_custom_call.1} parent=1 // pred_fallthru
      _
    // Predicated region
    $region14: #{tpu_custom_call.1} parent=1 // pred_check
      _
    $region15: #{tpu_custom_call.1} parent=1 // pred_check_branch
      %58 = sbr.rel (0) target = $region17
    $region16: #{tpu_custom_call.1} parent=1 // pred_region
      %s60 = ssub.s32 1024, 1024
      %61 = vsyncadd [#allocation9], %s60
      %s62 = sshll.u32 [#allocation8], 4
      %s63 = int_to_ptr.vmem [resolvable:$true] %s62
      %68 = dma.hbm_to_vmem [thread:$0]  %s3, 1024, %s63, [#allocation9], 128, 128, 8
    $region17: #{tpu_custom_call.1} parent=1 // pred_fallthru
      _
    // Predicated region
    $region18: #{tpu_custom_call.1} parent=1 // pred_check
      _
    $region19: #{tpu_custom_call.1} parent=1 // pred_check_branch
      %70 = sbr.rel (0) target = $region21
    $region20: #{tpu_custom_call.1} parent=1 // pred_region
      _
    $region21: #{tpu_custom_call.1} parent=1 // pred_fallthru
      _
    // Predicated region
    $region22: #{tpu_custom_call.1} parent=1 // pred_check
      _
    $region23: #{tpu_custom_call.1} parent=1 // pred_check_branch
      %72 = sbr.rel (0) target = $region25
    $region24: #{tpu_custom_call.1} parent=1 // pred_region
      %s74 = ssub.s32 2048, 2048
      %75 = vsyncadd [#allocation9], %s74
      %s76 = sshll.u32 [#allocation10], 4
      %s77 = int_to_ptr.vmem [resolvable:$true] %s76
      %82 = dma.hbm_to_vmem [thread:$0]  %s5, 2048, %s77, [#allocation9], 128, 128, 8
    $region25: #{tpu_custom_call.1} parent=1 // pred_fallthru
      _
    // Predicated region
    $region26: #{tpu_custom_call.1} parent=1 // pred_check
      _
    $region27: #{tpu_custom_call.1} parent=1 // pred_check_branch
      %84 = sbr.rel (0) target = $region29
    $region28: #{tpu_custom_call.1} parent=1 // pred_region
      _
    $region29: #{tpu_custom_call.1} parent=1 // pred_fallthru
      _
    // Predicated region
    $region30: #{tpu_custom_call.1} parent=1 // pred_check
      _
    $region31: #{tpu_custom_call.1} parent=1 // pred_check_branch
      %86 = sbr.rel (0) target = $region33
    $region32: #{tpu_custom_call.1} parent=1 // pred_region
      %s88 = ssub.s32 2048, 2048
      %89 = vsyncadd [#allocation12], %s88
      %s90 = sshll.u32 [#allocation11], 4
      %s91 = int_to_ptr.vmem [resolvable:$true] %s90
      %96 = dma.hbm_to_vmem [thread:$0]  %s7, 2048, %s91, [#allocation12], 128, 128, 8
    $region33: #{tpu_custom_call.1} parent=1 // pred_fallthru
      _
    // Predicated region
    $region34: #{tpu_custom_call.1} parent=1 // pred_check
      _
    $region35: #{tpu_custom_call.1} parent=1 // pred_check_branch
      %98 = sbr.rel (0) target = $region37
    $region36: #{tpu_custom_call.1} parent=1 // pred_region
      _
    $region37: #{tpu_custom_call.1} parent=1 // pred_fallthru
      _
    // Predicated region
    $region38: #{tpu_custom_call.1} parent=1 // pred_check
      _
    $region39: #{tpu_custom_call.1} parent=1 // pred_check_branch
      %100 = sbr.rel (0) target = $region41
    $region40: #{tpu_custom_call.1} parent=1 // pred_region
      %s102 = ssub.s32 2048, 2048
      %103 = vsyncadd [#allocation12], %s102
      %s104 = sshll.u32 [#allocation13], 4
      %s105 = int_to_ptr.vmem [resolvable:$true] %s104
      %110 = dma.hbm_to_vmem [thread:$0]  %s9, 2048, %s105, [#allocation12], 128, 128, 8
    $region41: #{tpu_custom_call.1} parent=1 // pred_fallthru
      _
    // Predicated region
    $region42: #{tpu_custom_call.1} parent=1 // pred_check
      _
    $region43: #{tpu_custom_call.1} parent=1 // pred_check_branch
      %112 = sbr.rel (0) target = $region45
    $region44: #{tpu_custom_call.1} parent=1 // pred_region
      _
    $region45: #{tpu_custom_call.1} parent=1 // pred_fallthru
      _
    // Predicated region
    $region46: #{tpu_custom_call.1} parent=1 // pred_check
      _
    $region47: #{tpu_custom_call.1} parent=1 // pred_check_branch
      %114 = sbr.rel (0) target = $region49
    $region48: #{tpu_custom_call.1} parent=1 // pred_region
      %115 = dma.done [#allocation3], 512
    $region49: #{tpu_custom_call.1} parent=1 // pred_fallthru
      _
    // Predicated region
    $region50: #{tpu_custom_call.1} parent=1 // pred_check
      _
    $region51: #{tpu_custom_call.1} parent=1 // pred_check_branch
      %117 = sbr.rel (0) target = $region53
    $region52: #{tpu_custom_call.1} parent=1 // pred_region
      %118 = dma.done [#allocation6], 512
    $region53: #{tpu_custom_call.1} parent=1 // pred_fallthru
      _
    // Predicated region
    $region54: #{tpu_custom_call.1} parent=1 // pred_check
      _
    $region55: #{tpu_custom_call.1} parent=1 // pred_check_branch
      %120 = sbr.rel (0) target = $region57
    $region56: #{tpu_custom_call.1} parent=1 // pred_region
      %121 = dma.done [#allocation6], 1024
    $region57: #{tpu_custom_call.1} parent=1 // pred_fallthru
      _
    // Predicated region
    $region58: #{tpu_custom_call.1} parent=1 // pred_check
      _
    $region59: #{tpu_custom_call.1} parent=1 // pred_check_branch
      %123 = sbr.rel (0) target = $region61
    $region60: #{tpu_custom_call.1} parent=1 // pred_region
      %124 = dma.done [#allocation9], 1024
    $region61: #{tpu_custom_call.1} parent=1 // pred_fallthru
      _
    // Predicated region
    $region62: #{tpu_custom_call.1} parent=1 // pred_check
      _
    $region63: #{tpu_custom_call.1} parent=1 // pred_check_branch
      %126 = sbr.rel (0) target = $region65
    $region64: #{tpu_custom_call.1} parent=1 // pred_region
      %127 = dma.done [#allocation9], 2048
    $region65: #{tpu_custom_call.1} parent=1 // pred_fallthru
      _
    // Predicated region
    $region66: #{tpu_custom_call.1} parent=1 // pred_check
      _
    $region67: #{tpu_custom_call.1} parent=1 // pred_check_branch
      %129 = sbr.rel (0) target = $region69
    $region68: #{tpu_custom_call.1} parent=1 // pred_region
      %130 = dma.done [#allocation12], 2048
    $region69: #{tpu_custom_call.1} parent=1 // pred_fallthru
      _
    // Predicated region
    $region70: #{tpu_custom_call.1} parent=1 // pred_check
      _
    $region71: #{tpu_custom_call.1} parent=1 // pred_check_branch
      %132 = sbr.rel (0) target = $region73
    $region72: #{tpu_custom_call.1} parent=1 // pred_region
      %133 = dma.done [#allocation12], 2048
    $region73: #{tpu_custom_call.1} parent=1 // pred_fallthru
      _
    %v134 = vlaneseq
    %v135 = vand.u32 %v134, 127
    %vm136 = vcmp.ge.s32.totalorder %v135, 16
    %v137 = vld [vmem:[#allocation2] sm:$0xff]
    %v138 = vld [vmem:[#allocation5] sm:$0xff]
    %v139 = vld [vmem:[#allocation7] sm:$0xff]
    %v140 = vld [vmem:[#allocation7 + $0x8] sm:$0xff]
    %v141 = vld [vmem:[#allocation8] sm:$0xff]
    %v142 = vld [vmem:[#allocation8 + $0x8] sm:$0xff]
    %vm143 = vcmask 130048
    %v145 = vsel %vm143, %v138, 0
    %147 = vmatprep.subr.mxu0 0.0
    %148 = vmatpush1.msra.mxu0 %v141
    %149 = vmatprep.subr.mxu0 0.0
    %150 = vmatpush1.msra.mxu0 %v142
    %151 = vmatprep.subr.mxu0 0.0
    %152 = vmatpush1.msra.mxu0 0.0
    %153 = vmatprep.subr.mxu0 0.0
    %154 = vmatpush1.msra.mxu0 0.0
    %155 = vmatprep.subr.mxu0 0.0
    %156 = vmatpush1.msra.mxu0 0.0
    %157 = vmatprep.subr.mxu0 0.0
    %158 = vmatpush1.msra.mxu0 0.0
    %159 = vmatprep.subr.mxu0 0.0
    %160 = vmatpush1.msra.mxu0 0.0
    %161 = vmatprep.subr.mxu0 0.0
    %162 = vmatpush1.msra.mxu0 0.0
    %163 = vmatprep.subr.mxu0 0.0
    %164 = vmatpush1.msra.mxu0 0.0
    %165 = vmatprep.subr.mxu0 0.0
    %166 = vmatpush1.msra.mxu0 0.0
    %167 = vmatprep.subr.mxu0 0.0
    %168 = vmatpush1.msra.mxu0 0.0
    %169 = vmatprep.subr.mxu0 0.0
    %170 = vmatpush1.msra.mxu0 0.0
    %171 = vmatprep.subr.mxu0 0.0
    %172 = vmatpush1.msra.mxu0 0.0
    %173 = vmatprep.subr.mxu0 0.0
    %174 = vmatpush1.msra.mxu0 0.0
    %175 = vmatprep.subr.mxu0 0.0
    %176 = vmatpush1.msra.mxu0 0.0
    %177 = vmatprep.subr.mxu0 0.0
    %178 = vmatpush1.msra.mxu0 0.0
    %179 = vmatprep.subr.mxu0 0.0
    %180 = vmatpush1.msra.mxu0 0.0
    %181 = vmatprep.subr.mxu0 0.0
    %182 = vmatpush1.msra.mxu0 0.0
    %183 = vmatprep.subr.mxu0 0.0
    %184 = vmatpush1.msra.mxu0 0.0
    %185 = vmatprep.subr.mxu0 0.0
    %186 = vmatpush1.msra.mxu0 0.0
    %187 = vmatprep.subr.mxu0 0.0
    %188 = vmatpush1.msra.mxu0 0.0
    %189 = vmatprep.subr.mxu0 0.0
    %190 = vmatpush1.msra.mxu0 0.0
    %191 = vmatprep.subr.mxu0 0.0
    %192 = vmatpush1.msra.mxu0 0.0
    %193 = vmatprep.subr.mxu0 0.0
    %194 = vmatpush1.msra.mxu0 0.0
    %195 = vmatprep.subr.mxu0 0.0
    %196 = vmatpush1.msra.mxu0 0.0
    %197 = vmatprep.subr.mxu0 0.0
    %198 = vmatpush1.msra.mxu0 0.0
    %199 = vmatprep.subr.mxu0 0.0
    %200 = vmatpush1.msra.mxu0 0.0
    %201 = vmatprep.subr.mxu0 0.0
    %202 = vmatpush1.msra.mxu0 0.0
    %203 = vmatprep.subr.mxu0 0.0
    %204 = vmatpush1.msra.mxu0 0.0
    %205 = vmatprep.subr.mxu0 0.0
    %206 = vmatpush1.msra.mxu0 0.0
    %207 = vmatprep.subr.mxu0 0.0
    %208 = vmatpush1.msra.mxu0 0.0
    %209 = vmatprep.subr.mxu0 0.0
    %210 = vmatpush1.msra.mxu0 0.0
    %211 = vmatprep.mubr.f32.mxu0 0.0
    %212 = vmatmul.mubr.f32.gmra.mrb[0].mxu0 %v145
    %v213 = vpop.f32.mrb[0].mxu0
    %v214 = vadd.f32 0.0, %v213
    %v215 = vpop.f32.mrb[0].mxu0
    %216 = vdwg.mxu0
    %v218 = vsel %vm143, %v137, 0
    %220 = vmatprep.subr.mxu0 0.0
    %221 = vmatpush1.msra.mxu0 %v139
    %222 = vmatprep.subr.mxu0 0.0
    %223 = vmatpush1.msra.mxu0 %v140
    %224 = vmatprep.subr.mxu0 0.0
    %225 = vmatpush1.msra.mxu0 0.0
    %226 = vmatprep.subr.mxu0 0.0
    %227 = vmatpush1.msra.mxu0 0.0
    %228 = vmatprep.subr.mxu0 0.0
    %229 = vmatpush1.msra.mxu0 0.0
    %230 = vmatprep.subr.mxu0 0.0
    %231 = vmatpush1.msra.mxu0 0.0
    %232 = vmatprep.subr.mxu0 0.0
    %233 = vmatpush1.msra.mxu0 0.0
    %234 = vmatprep.subr.mxu0 0.0
    %235 = vmatpush1.msra.mxu0 0.0
    %236 = vmatprep.subr.mxu0 0.0
    %237 = vmatpush1.msra.mxu0 0.0
    %238 = vmatprep.subr.mxu0 0.0
    %239 = vmatpush1.msra.mxu0 0.0
    %240 = vmatprep.subr.mxu0 0.0
    %241 = vmatpush1.msra.mxu0 0.0
    %242 = vmatprep.subr.mxu0 0.0
    %243 = vmatpush1.msra.mxu0 0.0
    %244 = vmatprep.subr.mxu0 0.0
    %245 = vmatpush1.msra.mxu0 0.0
    %246 = vmatprep.subr.mxu0 0.0
    %247 = vmatpush1.msra.mxu0 0.0
    %248 = vmatprep.subr.mxu0 0.0
    %249 = vmatpush1.msra.mxu0 0.0
    %250 = vmatprep.subr.mxu0 0.0
    %251 = vmatpush1.msra.mxu0 0.0
    %252 = vmatprep.subr.mxu0 0.0
    %253 = vmatpush1.msra.mxu0 0.0
    %254 = vmatprep.subr.mxu0 0.0
    %255 = vmatpush1.msra.mxu0 0.0
    %256 = vmatprep.subr.mxu0 0.0
    %257 = vmatpush1.msra.mxu0 0.0
    %258 = vmatprep.subr.mxu0 0.0
    %259 = vmatpush1.msra.mxu0 0.0
    %260 = vmatprep.subr.mxu0 0.0
    %261 = vmatpush1.msra.mxu0 0.0
    %262 = vmatprep.subr.mxu0 0.0
    %263 = vmatpush1.msra.mxu0 0.0
    %264 = vmatprep.subr.mxu0 0.0
    %265 = vmatpush1.msra.mxu0 0.0
    %266 = vmatprep.subr.mxu0 0.0
    %267 = vmatpush1.msra.mxu0 0.0
    %268 = vmatprep.subr.mxu0 0.0
    %269 = vmatpush1.msra.mxu0 0.0
    %270 = vmatprep.subr.mxu0 0.0
    %271 = vmatpush1.msra.mxu0 0.0
    %272 = vmatprep.subr.mxu0 0.0
    %273 = vmatpush1.msra.mxu0 0.0
    %274 = vmatprep.subr.mxu0 0.0
    %275 = vmatpush1.msra.mxu0 0.0
    %276 = vmatprep.subr.mxu0 0.0
    %277 = vmatpush1.msra.mxu0 0.0
    %278 = vmatprep.subr.mxu0 0.0
    %279 = vmatpush1.msra.mxu0 0.0
    %280 = vmatprep.subr.mxu0 0.0
    %281 = vmatpush1.msra.mxu0 0.0
    %282 = vmatprep.subr.mxu0 0.0
    %283 = vmatpush1.msra.mxu0 0.0
    %284 = vmatprep.mubr.f32.mxu0 0.0
    %285 = vmatmul.mubr.f32.gmra.mrb[0].mxu0 %v218
    %v286 = vpop.f32.mrb[0].mxu0
    %v287 = vadd.f32 %v214, %v286
    %v288 = vpop.f32.mrb[0].mxu0
    %289 = vdwg.mxu0
    %v290 = vld [vmem:[%s4] sm:$0x1]
    %v292 = vlaneseq
    %v293 = vshrl.u32 %v292, 7
    %v294 = vsub.s32 0, %v293
    %v295 = vrot.slane %v290, %v294
    %v297 = vadd.f32 %v287, %v295
    %v298 = vxor.u32 %v297, 2147483648
    %v299 = vmul.f32 %v298, 1.442695
    %v300 = vpow.pop %v299
    %v301 = vadd.f32 %v300, 1.0
    %v302 = vrcp.pop %v301
    %v303 = vmul.f32 1.0, %v302
    %v304 = vmul.f32 %v297, %v303
    %v305 = vld [vmem:[#allocation10] sm:$0xff]
    %v306 = vld [vmem:[#allocation10 + $0x8] sm:$0xff]
    %v307 = vld [vmem:[#allocation10 + $0x10] sm:$0xff]
    %v308 = vld [vmem:[#allocation10 + $0x18] sm:$0xff]
    %v309 = vld [vmem:[%s6] sm:$0x1]
    %v311 = vlaneseq
    %v312 = vshrl.u32 %v311, 7
    %v313 = vsub.s32 0, %v312
    %v314 = vrot.slane %v309, %v313
    %vm316 = vcmask 261120
    %v318 = vsel %vm316, %v304, 0
    %320 = vmatprep.subr.mxu0 0.0
    %321 = vmatpush1.msra.mxu0 %v305
    %322 = vmatprep.subr.mxu0 0.0
    %323 = vmatpush1.msra.mxu0 %v306
    %324 = vmatprep.subr.mxu0 0.0
    %325 = vmatpush1.msra.mxu0 %v307
    %326 = vmatprep.subr.mxu0 0.0
    %327 = vmatpush1.msra.mxu0 %v308
    %328 = vmatprep.subr.mxu0 0.0
    %329 = vmatpush1.msra.mxu0 0.0
    %330 = vmatprep.subr.mxu0 0.0
    %331 = vmatpush1.msra.mxu0 0.0
    %332 = vmatprep.subr.mxu0 0.0
    %333 = vmatpush1.msra.mxu0 0.0
    %334 = vmatprep.subr.mxu0 0.0
    %335 = vmatpush1.msra.mxu0 0.0
    %336 = vmatprep.subr.mxu0 0.0
    %337 = vmatpush1.msra.mxu0 0.0
    %338 = vmatprep.subr.mxu0 0.0
    %339 = vmatpush1.msra.mxu0 0.0
    %340 = vmatprep.subr.mxu0 0.0
    %341 = vmatpush1.msra.mxu0 0.0
    %342 = vmatprep.subr.mxu0 0.0
    %343 = vmatpush1.msra.mxu0 0.0
    %344 = vmatprep.subr.mxu0 0.0
    %345 = vmatpush1.msra.mxu0 0.0
    %346 = vmatprep.subr.mxu0 0.0
    %347 = vmatpush1.msra.mxu0 0.0
    %348 = vmatprep.subr.mxu0 0.0
    %349 = vmatpush1.msra.mxu0 0.0
    %350 = vmatprep.subr.mxu0 0.0
    %351 = vmatpush1.msra.mxu0 0.0
    %352 = vmatprep.subr.mxu0 0.0
    %353 = vmatpush1.msra.mxu0 0.0
    %354 = vmatprep.subr.mxu0 0.0
    %355 = vmatpush1.msra.mxu0 0.0
    %356 = vmatprep.subr.mxu0 0.0
    %357 = vmatpush1.msra.mxu0 0.0
    %358 = vmatprep.subr.mxu0 0.0
    %359 = vmatpush1.msra.mxu0 0.0
    %360 = vmatprep.subr.mxu0 0.0
    %361 = vmatpush1.msra.mxu0 0.0
    %362 = vmatprep.subr.mxu0 0.0
    %363 = vmatpush1.msra.mxu0 0.0
    %364 = vmatprep.subr.mxu0 0.0
    %365 = vmatpush1.msra.mxu0 0.0
    %366 = vmatprep.subr.mxu0 0.0
    %367 = vmatpush1.msra.mxu0 0.0
    %368 = vmatprep.subr.mxu0 0.0
    %369 = vmatpush1.msra.mxu0 0.0
    %370 = vmatprep.subr.mxu0 0.0
    %371 = vmatpush1.msra.mxu0 0.0
    %372 = vmatprep.subr.mxu0 0.0
    %373 = vmatpush1.msra.mxu0 0.0
    %374 = vmatprep.subr.mxu0 0.0
    %375 = vmatpush1.msra.mxu0 0.0
    %376 = vmatprep.subr.mxu0 0.0
    %377 = vmatpush1.msra.mxu0 0.0
    %378 = vmatprep.subr.mxu0 0.0
    %379 = vmatpush1.msra.mxu0 0.0
    %380 = vmatprep.subr.mxu0 0.0
    %381 = vmatpush1.msra.mxu0 0.0
    %382 = vmatprep.subr.mxu0 0.0
    %383 = vmatpush1.msra.mxu0 0.0
    %384 = vmatprep.mubr.f32.mxu0 0.0
    %385 = vmatmul.mubr.f32.gmra.mrb[0].mxu0 %v318
    %v386 = vpop.f32.mrb[0].mxu0
    %v387 = vadd.f32 %v314, %v386
    %v388 = vpop.f32.mrb[0].mxu0
    %389 = vdwg.mxu0
    %v390 = vxor.u32 %v387, 2147483648
    %v391 = vmul.f32 %v390, 1.442695
    %v392 = vpow.pop %v391
    %v393 = vadd.f32 %v392, 1.0
    %v394 = vrcp.pop %v393
    %v395 = vmul.f32 1.0, %v394
    %v396 = vmul.f32 %v387, %v395
    %v397 = vld [vmem:[#allocation11] sm:$0xff]
    %v398 = vld [vmem:[#allocation11 + $0x8] sm:$0xff]
    %v399 = vld [vmem:[#allocation11 + $0x10] sm:$0xff]
    %v400 = vld [vmem:[#allocation11 + $0x18] sm:$0xff]
    %v401 = vld [vmem:[%s8] sm:$0x1]
    %v403 = vlaneseq
    %v404 = vshrl.u32 %v403, 7
    %v405 = vsub.s32 0, %v404
    %v406 = vrot.slane %v401, %v405
    %v409 = vsel %vm316, %v396, 0
    %411 = vmatprep.subr.mxu0 0.0
    %412 = vmatpush1.msra.mxu0 %v397
    %413 = vmatprep.subr.mxu0 0.0
    %414 = vmatpush1.msra.mxu0 %v398
    %415 = vmatprep.subr.mxu0 0.0
    %416 = vmatpush1.msra.mxu0 %v399
    %417 = vmatprep.subr.mxu0 0.0
    %418 = vmatpush1.msra.mxu0 %v400
    %419 = vmatprep.subr.mxu0 0.0
    %420 = vmatpush1.msra.mxu0 0.0
    %421 = vmatprep.subr.mxu0 0.0
    %422 = vmatpush1.msra.mxu0 0.0
    %423 = vmatprep.subr.mxu0 0.0
    %424 = vmatpush1.msra.mxu0 0.0
    %425 = vmatprep.subr.mxu0 0.0
    %426 = vmatpush1.msra.mxu0 0.0
    %427 = vmatprep.subr.mxu0 0.0
    %428 = vmatpush1.msra.mxu0 0.0
    %429 = vmatprep.subr.mxu0 0.0
    %430 = vmatpush1.msra.mxu0 0.0
    %431 = vmatprep.subr.mxu0 0.0
    %432 = vmatpush1.msra.mxu0 0.0
    %433 = vmatprep.subr.mxu0 0.0
    %434 = vmatpush1.msra.mxu0 0.0
    %435 = vmatprep.subr.mxu0 0.0
    %436 = vmatpush1.msra.mxu0 0.0
    %437 = vmatprep.subr.mxu0 0.0
    %438 = vmatpush1.msra.mxu0 0.0
    %439 = vmatprep.subr.mxu0 0.0
    %440 = vmatpush1.msra.mxu0 0.0
    %441 = vmatprep.subr.mxu0 0.0
    %442 = vmatpush1.msra.mxu0 0.0
    %443 = vmatprep.subr.mxu0 0.0
    %444 = vmatpush1.msra.mxu0 0.0
    %445 = vmatprep.subr.mxu0 0.0
    %446 = vmatpush1.msra.mxu0 0.0
    %447 = vmatprep.subr.mxu0 0.0
    %448 = vmatpush1.msra.mxu0 0.0
    %449 = vmatprep.subr.mxu0 0.0
    %450 = vmatpush1.msra.mxu0 0.0
    %451 = vmatprep.subr.mxu0 0.0
    %452 = vmatpush1.msra.mxu0 0.0
    %453 = vmatprep.subr.mxu0 0.0
    %454 = vmatpush1.msra.mxu0 0.0
    %455 = vmatprep.subr.mxu0 0.0
    %456 = vmatpush1.msra.mxu0 0.0
    %457 = vmatprep.subr.mxu0 0.0
    %458 = vmatpush1.msra.mxu0 0.0
    %459 = vmatprep.subr.mxu0 0.0
    %460 = vmatpush1.msra.mxu0 0.0
    %461 = vmatprep.subr.mxu0 0.0
    %462 = vmatpush1.msra.mxu0 0.0
    %463 = vmatprep.subr.mxu0 0.0
    %464 = vmatpush1.msra.mxu0 0.0
    %465 = vmatprep.subr.mxu0 0.0
    %466 = vmatpush1.msra.mxu0 0.0
    %467 = vmatprep.subr.mxu0 0.0
    %468 = vmatpush1.msra.mxu0 0.0
    %469 = vmatprep.subr.mxu0 0.0
    %470 = vmatpush1.msra.mxu0 0.0
    %471 = vmatprep.subr.mxu0 0.0
    %472 = vmatpush1.msra.mxu0 0.0
    %473 = vmatprep.subr.mxu0 0.0
    %474 = vmatpush1.msra.mxu0 0.0
    %475 = vmatprep.mubr.f32.mxu0 0.0
    %476 = vmatmul.mubr.f32.gmra.mrb[0].mxu0 %v409
    %v477 = vpop.f32.mrb[0].mxu0
    %v478 = vadd.f32 %v406, %v477
    %v479 = vpop.f32.mrb[0].mxu0
    %480 = vdwg.mxu0
    %v481 = vxor.u32 %v478, 2147483648
    %v482 = vmul.f32 %v481, 1.442695
    %v483 = vpow.pop %v482
    %v484 = vadd.f32 %v483, 1.0
    %v485 = vrcp.pop %v484
    %v486 = vmul.f32 1.0, %v485
    %v487 = vmul.f32 %v478, %v486
    %v488 = vld [vmem:[#allocation13] sm:$0xff]
    %v489 = vld [vmem:[#allocation13 + $0x8] sm:$0xff]
    %v490 = vld [vmem:[#allocation13 + $0x10] sm:$0xff]
    %v491 = vld [vmem:[#allocation13 + $0x18] sm:$0xff]
    %v492 = vld [vmem:[%s10] sm:$0x1]
    %v494 = vlaneseq
    %v495 = vshrl.u32 %v494, 7
    %v496 = vsub.s32 0, %v495
    %v497 = vrot.slane %v492, %v496
    %v500 = vsel %vm316, %v487, 0
    %502 = vmatprep.subr.mxu0 0.0
    %503 = vmatpush1.msra.mxu0 %v488
    %504 = vmatprep.subr.mxu0 0.0
    %505 = vmatpush1.msra.mxu0 %v489
    %506 = vmatprep.subr.mxu0 0.0
    %507 = vmatpush1.msra.mxu0 %v490
    %508 = vmatprep.subr.mxu0 0.0
    %509 = vmatpush1.msra.mxu0 %v491
    %510 = vmatprep.subr.mxu0 0.0
    %511 = vmatpush1.msra.mxu0 0.0
    %512 = vmatprep.subr.mxu0 0.0
    %513 = vmatpush1.msra.mxu0 0.0
    %514 = vmatprep.subr.mxu0 0.0
    %515 = vmatpush1.msra.mxu0 0.0
    %516 = vmatprep.subr.mxu0 0.0
    %517 = vmatpush1.msra.mxu0 0.0
    %518 = vmatprep.subr.mxu0 0.0
    %519 = vmatpush1.msra.mxu0 0.0
    %520 = vmatprep.subr.mxu0 0.0
    %521 = vmatpush1.msra.mxu0 0.0
    %522 = vmatprep.subr.mxu0 0.0
    %523 = vmatpush1.msra.mxu0 0.0
    %524 = vmatprep.subr.mxu0 0.0
    %525 = vmatpush1.msra.mxu0 0.0
    %526 = vmatprep.subr.mxu0 0.0
    %527 = vmatpush1.msra.mxu0 0.0
    %528 = vmatprep.subr.mxu0 0.0
    %529 = vmatpush1.msra.mxu0 0.0
    %530 = vmatprep.subr.mxu0 0.0
    %531 = vmatpush1.msra.mxu0 0.0
    %532 = vmatprep.subr.mxu0 0.0
    %533 = vmatpush1.msra.mxu0 0.0
    %534 = vmatprep.subr.mxu0 0.0
    %535 = vmatpush1.msra.mxu0 0.0
    %536 = vmatprep.subr.mxu0 0.0
    %537 = vmatpush1.msra.mxu0 0.0
    %538 = vmatprep.subr.mxu0 0.0
    %539 = vmatpush1.msra.mxu0 0.0
    %540 = vmatprep.subr.mxu0 0.0
    %541 = vmatpush1.msra.mxu0 0.0
    %542 = vmatprep.subr.mxu0 0.0
    %543 = vmatpush1.msra.mxu0 0.0
    %544 = vmatprep.subr.mxu0 0.0
    %545 = vmatpush1.msra.mxu0 0.0
    %546 = vmatprep.subr.mxu0 0.0
    %547 = vmatpush1.msra.mxu0 0.0
    %548 = vmatprep.subr.mxu0 0.0
    %549 = vmatpush1.msra.mxu0 0.0
    %550 = vmatprep.subr.mxu0 0.0
    %551 = vmatpush1.msra.mxu0 0.0
    %552 = vmatprep.subr.mxu0 0.0
    %553 = vmatpush1.msra.mxu0 0.0
    %554 = vmatprep.subr.mxu0 0.0
    %555 = vmatpush1.msra.mxu0 0.0
    %556 = vmatprep.subr.mxu0 0.0
    %557 = vmatpush1.msra.mxu0 0.0
    %558 = vmatprep.subr.mxu0 0.0
    %559 = vmatpush1.msra.mxu0 0.0
    %560 = vmatprep.subr.mxu0 0.0
    %561 = vmatpush1.msra.mxu0 0.0
    %562 = vmatprep.subr.mxu0 0.0
    %563 = vmatpush1.msra.mxu0 0.0
    %564 = vmatprep.subr.mxu0 0.0
    %565 = vmatpush1.msra.mxu0 0.0
    %566 = vmatprep.mubr.f32.mxu0 0.0
    %567 = vmatmul.mubr.f32.gmra.mrb[0].mxu0 %v500
    %v568 = vpop.f32.mrb[0].mxu0
    %v569 = vadd.f32 %v497, %v568
    %v570 = vpop.f32.mrb[0].mxu0
    %571 = vdwg.mxu0
    %v572 = vxor.u32 %v569, 2147483648
    %v573 = vmul.f32 %v572, 1.442695
    %v574 = vpow.pop %v573
    %v575 = vadd.f32 %v574, 1.0
    %v576 = vrcp.pop %v575
    %v577 = vmul.f32 1.0, %v576
    %v578 = vmul.f32 %v577, 4.0
    %v579 = vadd.f32 %v578, -5.0
    %v580 = vmul.f32 %v579, 1.442695
    %v581 = vpow.pop %v580
    %v582 = vsel %vm136, %v581, %v569
    %583 = vst.msk [vmem:[#allocation14] sm:$0xff] %vm316, %v582
    %s584 = scalar_lea.vmem [#allocation2], 8
    %v585 = vld [vmem:[%s584] sm:$0xff]
    %s586 = scalar_lea.vmem [#allocation5], 8
    %v587 = vld [vmem:[%s586] sm:$0xff]
    %s588 = scalar_lea.vmem [#allocation7], 16
    %v589 = vld [vmem:[%s588] sm:$0xff]
    %v590 = vld [vmem:[%s588 + $0x8] sm:$0xff]
    %s591 = scalar_lea.vmem [#allocation8], 16
    %v592 = vld [vmem:[%s591] sm:$0xff]
    %v593 = vld [vmem:[%s591 + $0x8] sm:$0xff]
    %v595 = vsel %vm143, %v587, 0
    %597 = vmatprep.subr.mxu0 0.0
    %598 = vmatpush1.msra.mxu0 %v592
    %599 = vmatprep.subr.mxu0 0.0
    %600 = vmatpush1.msra.mxu0 %v593
    %601 = vmatprep.subr.mxu0 0.0
    %602 = vmatpush1.msra.mxu0 0.0
    %603 = vmatprep.subr.mxu0 0.0
    %604 = vmatpush1.msra.mxu0 0.0
    %605 = vmatprep.subr.mxu0 0.0
    %606 = vmatpush1.msra.mxu0 0.0
    %607 = vmatprep.subr.mxu0 0.0
    %608 = vmatpush1.msra.mxu0 0.0
    %609 = vmatprep.subr.mxu0 0.0
    %610 = vmatpush1.msra.mxu0 0.0
    %611 = vmatprep.subr.mxu0 0.0
    %612 = vmatpush1.msra.mxu0 0.0
    %613 = vmatprep.subr.mxu0 0.0
    %614 = vmatpush1.msra.mxu0 0.0
    %615 = vmatprep.subr.mxu0 0.0
    %616 = vmatpush1.msra.mxu0 0.0
    %617 = vmatprep.subr.mxu0 0.0
    %618 = vmatpush1.msra.mxu0 0.0
    %619 = vmatprep.subr.mxu0 0.0
    %620 = vmatpush1.msra.mxu0 0.0
    %621 = vmatprep.subr.mxu0 0.0
    %622 = vmatpush1.msra.mxu0 0.0
    %623 = vmatprep.subr.mxu0 0.0
    %624 = vmatpush1.msra.mxu0 0.0
    %625 = vmatprep.subr.mxu0 0.0
    %626 = vmatpush1.msra.mxu0 0.0
    %627 = vmatprep.subr.mxu0 0.0
    %628 = vmatpush1.msra.mxu0 0.0
    %629 = vmatprep.subr.mxu0 0.0
    %630 = vmatpush1.msra.mxu0 0.0
    %631 = vmatprep.subr.mxu0 0.0
    %632 = vmatpush1.msra.mxu0 0.0
    %633 = vmatprep.subr.mxu0 0.0
    %634 = vmatpush1.msra.mxu0 0.0
    %635 = vmatprep.subr.mxu0 0.0
    %636 = vmatpush1.msra.mxu0 0.0
    %637 = vmatprep.subr.mxu0 0.0
    %638 = vmatpush1.msra.mxu0 0.0
    %639 = vmatprep.subr.mxu0 0.0
    %640 = vmatpush1.msra.mxu0 0.0
    %641 = vmatprep.subr.mxu0 0.0
    %642 = vmatpush1.msra.mxu0 0.0
    %643 = vmatprep.subr.mxu0 0.0
    %644 = vmatpush1.msra.mxu0 0.0
    %645 = vmatprep.subr.mxu0 0.0
    %646 = vmatpush1.msra.mxu0 0.0
    %647 = vmatprep.subr.mxu0 0.0
    %648 = vmatpush1.msra.mxu0 0.0
    %649 = vmatprep.subr.mxu0 0.0
    %650 = vmatpush1.msra.mxu0 0.0
    %651 = vmatprep.subr.mxu0 0.0
    %652 = vmatpush1.msra.mxu0 0.0
    %653 = vmatprep.subr.mxu0 0.0
    %654 = vmatpush1.msra.mxu0 0.0
    %655 = vmatprep.subr.mxu0 0.0
    %656 = vmatpush1.msra.mxu0 0.0
    %657 = vmatprep.subr.mxu0 0.0
    %658 = vmatpush1.msra.mxu0 0.0
    %659 = vmatprep.subr.mxu0 0.0
    %660 = vmatpush1.msra.mxu0 0.0
    %661 = vmatprep.mubr.f32.mxu0 0.0
    %662 = vmatmul.mubr.f32.gmra.mrb[0].mxu0 %v595
    %v663 = vpop.f32.mrb[0].mxu0
    %v664 = vadd.f32 0.0, %v663
    %v665 = vpop.f32.mrb[0].mxu0
    %666 = vdwg.mxu0
    %v668 = vsel %vm143, %v585, 0
    %670 = vmatprep.subr.mxu0 0.0
    %671 = vmatpush1.msra.mxu0 %v589
    %672 = vmatprep.subr.mxu0 0.0
    %673 = vmatpush1.msra.mxu0 %v590
    %674 = vmatprep.subr.mxu0 0.0
    %675 = vmatpush1.msra.mxu0 0.0
    %676 = vmatprep.subr.mxu0 0.0
    %677 = vmatpush1.msra.mxu0 0.0
    %678 = vmatprep.subr.mxu0 0.0
    %679 = vmatpush1.msra.mxu0 0.0
    %680 = vmatprep.subr.mxu0 0.0
    %681 = vmatpush1.msra.mxu0 0.0
    %682 = vmatprep.subr.mxu0 0.0
    %683 = vmatpush1.msra.mxu0 0.0
    %684 = vmatprep.subr.mxu0 0.0
    %685 = vmatpush1.msra.mxu0 0.0
    %686 = vmatprep.subr.mxu0 0.0
    %687 = vmatpush1.msra.mxu0 0.0
    %688 = vmatprep.subr.mxu0 0.0
    %689 = vmatpush1.msra.mxu0 0.0
    %690 = vmatprep.subr.mxu0 0.0
    %691 = vmatpush1.msra.mxu0 0.0
    %692 = vmatprep.subr.mxu0 0.0
    %693 = vmatpush1.msra.mxu0 0.0
    %694 = vmatprep.subr.mxu0 0.0
    %695 = vmatpush1.msra.mxu0 0.0
    %696 = vmatprep.subr.mxu0 0.0
    %697 = vmatpush1.msra.mxu0 0.0
    %698 = vmatprep.subr.mxu0 0.0
    %699 = vmatpush1.msra.mxu0 0.0
    %700 = vmatprep.subr.mxu0 0.0
    %701 = vmatpush1.msra.mxu0 0.0
    %702 = vmatprep.subr.mxu0 0.0
    %703 = vmatpush1.msra.mxu0 0.0
    %704 = vmatprep.subr.mxu0 0.0
    %705 = vmatpush1.msra.mxu0 0.0
    %706 = vmatprep.subr.mxu0 0.0
    %707 = vmatpush1.msra.mxu0 0.0
    %708 = vmatprep.subr.mxu0 0.0
    %709 = vmatpush1.msra.mxu0 0.0
    %710 = vmatprep.subr.mxu0 0.0
    %711 = vmatpush1.msra.mxu0 0.0
    %712 = vmatprep.subr.mxu0 0.0
    %713 = vmatpush1.msra.mxu0 0.0
    %714 = vmatprep.subr.mxu0 0.0
    %715 = vmatpush1.msra.mxu0 0.0
    %716 = vmatprep.subr.mxu0 0.0
    %717 = vmatpush1.msra.mxu0 0.0
    %718 = vmatprep.subr.mxu0 0.0
    %719 = vmatpush1.msra.mxu0 0.0
    %720 = vmatprep.subr.mxu0 0.0
    %721 = vmatpush1.msra.mxu0 0.0
    %722 = vmatprep.subr.mxu0 0.0
    %723 = vmatpush1.msra.mxu0 0.0
    %724 = vmatprep.subr.mxu0 0.0
    %725 = vmatpush1.msra.mxu0 0.0
    %726 = vmatprep.subr.mxu0 0.0
    %727 = vmatpush1.msra.mxu0 0.0
    %728 = vmatprep.subr.mxu0 0.0
    %729 = vmatpush1.msra.mxu0 0.0
    %730 = vmatprep.subr.mxu0 0.0
    %731 = vmatpush1.msra.mxu0 0.0
    %732 = vmatprep.subr.mxu0 0.0
    %733 = vmatpush1.msra.mxu0 0.0
    %734 = vmatprep.mubr.f32.mxu0 0.0
    %735 = vmatmul.mubr.f32.gmra.mrb[0].mxu0 %v668
    %v736 = vpop.f32.mrb[0].mxu0
    %v737 = vadd.f32 %v664, %v736
    %v738 = vpop.f32.mrb[0].mxu0
    %739 = vdwg.mxu0
    %s740 = scalar_lea.vmem %s4, 1
    %v741 = vld [vmem:[%s740] sm:$0x1]
    %v743 = vlaneseq
    %v744 = vshrl.u32 %v743, 7
    %v745 = vsub.s32 0, %v744
    %v746 = vrot.slane %v741, %v745
    %v748 = vadd.f32 %v737, %v746
    %v749 = vxor.u32 %v748, 2147483648
    %v750 = vmul.f32 %v749, 1.442695
    %v751 = vpow.pop %v750
    %v752 = vadd.f32 %v751, 1.0
    %v753 = vrcp.pop %v752
    %v754 = vmul.f32 1.0, %v753
    %v755 = vmul.f32 %v748, %v754
    %s756 = scalar_lea.vmem [#allocation10], 32
    %v757 = vld [vmem:[%s756] sm:$0xff]
    %v758 = vld [vmem:[%s756 + $0x8] sm:$0xff]
    %v759 = vld [vmem:[%s756 + $0x10] sm:$0xff]
    %v760 = vld [vmem:[%s756 + $0x18] sm:$0xff]
    %s761 = scalar_lea.vmem %s6, 1
    %v762 = vld [vmem:[%s761] sm:$0x1]
    %v764 = vlaneseq
    %v765 = vshrl.u32 %v764, 7
    %v766 = vsub.s32 0, %v765
    %v767 = vrot.slane %v762, %v766
    %v770 = vsel %vm316, %v755, 0
    %772 = vmatprep.subr.mxu0 0.0
    %773 = vmatpush1.msra.mxu0 %v757
    %774 = vmatprep.subr.mxu0 0.0
    %775 = vmatpush1.msra.mxu0 %v758
    %776 = vmatprep.subr.mxu0 0.0
    %777 = vmatpush1.msra.mxu0 %v759
    %778 = vmatprep.subr.mxu0 0.0
    %779 = vmatpush1.msra.mxu0 %v760
    %780 = vmatprep.subr.mxu0 0.0
    %781 = vmatpush1.msra.mxu0 0.0
    %782 = vmatprep.subr.mxu0 0.0
    %783 = vmatpush1.msra.mxu0 0.0
    %784 = vmatprep.subr.mxu0 0.0
    %785 = vmatpush1.msra.mxu0 0.0
    %786 = vmatprep.subr.mxu0 0.0
    %787 = vmatpush1.msra.mxu0 0.0
    %788 = vmatprep.subr.mxu0 0.0
    %789 = vmatpush1.msra.mxu0 0.0
    %790 = vmatprep.subr.mxu0 0.0
    %791 = vmatpush1.msra.mxu0 0.0
    %792 = vmatprep.subr.mxu0 0.0
    %793 = vmatpush1.msra.mxu0 0.0
    %794 = vmatprep.subr.mxu0 0.0
    %795 = vmatpush1.msra.mxu0 0.0
    %796 = vmatprep.subr.mxu0 0.0
    %797 = vmatpush1.msra.mxu0 0.0
    %798 = vmatprep.subr.mxu0 0.0
    %799 = vmatpush1.msra.mxu0 0.0
    %800 = vmatprep.subr.mxu0 0.0
    %801 = vmatpush1.msra.mxu0 0.0
    %802 = vmatprep.subr.mxu0 0.0
    %803 = vmatpush1.msra.mxu0 0.0
    %804 = vmatprep.subr.mxu0 0.0
    %805 = vmatpush1.msra.mxu0 0.0
    %806 = vmatprep.subr.mxu0 0.0
    %807 = vmatpush1.msra.mxu0 0.0
    %808 = vmatprep.subr.mxu0 0.0
    %809 = vmatpush1.msra.mxu0 0.0
    %810 = vmatprep.subr.mxu0 0.0
    %811 = vmatpush1.msra.mxu0 0.0
    %812 = vmatprep.subr.mxu0 0.0
    %813 = vmatpush1.msra.mxu0 0.0
    %814 = vmatprep.subr.mxu0 0.0
    %815 = vmatpush1.msra.mxu0 0.0
    %816 = vmatprep.subr.mxu0 0.0
    %817 = vmatpush1.msra.mxu0 0.0
    %818 = vmatprep.subr.mxu0 0.0
    %819 = vmatpush1.msra.mxu0 0.0
    %820 = vmatprep.subr.mxu0 0.0
    %821 = vmatpush1.msra.mxu0 0.0
    %822 = vmatprep.subr.mxu0 0.0
    %823 = vmatpush1.msra.mxu0 0.0
    %824 = vmatprep.subr.mxu0 0.0
    %825 = vmatpush1.msra.mxu0 0.0
    %826 = vmatprep.subr.mxu0 0.0
    %827 = vmatpush1.msra.mxu0 0.0
    %828 = vmatprep.subr.mxu0 0.0
    %829 = vmatpush1.msra.mxu0 0.0
    %830 = vmatprep.subr.mxu0 0.0
    %831 = vmatpush1.msra.mxu0 0.0
    %832 = vmatprep.subr.mxu0 0.0
    %833 = vmatpush1.msra.mxu0 0.0
    %834 = vmatprep.subr.mxu0 0.0
    %835 = vmatpush1.msra.mxu0 0.0
    %836 = vmatprep.mubr.f32.mxu0 0.0
    %837 = vmatmul.mubr.f32.gmra.mrb[0].mxu0 %v770
    %v838 = vpop.f32.mrb[0].mxu0
    %v839 = vadd.f32 %v767, %v838
    %v840 = vpop.f32.mrb[0].mxu0
    %841 = vdwg.mxu0
    %v842 = vxor.u32 %v839, 2147483648
    %v843 = vmul.f32 %v842, 1.442695
    %v844 = vpow.pop %v843
    %v845 = vadd.f32 %v844, 1.0
    %v846 = vrcp.pop %v845
    %v847 = vmul.f32 1.0, %v846
    %v848 = vmul.f32 %v839, %v847
    %s849 = scalar_lea.vmem [#allocation11], 32
    %v850 = vld [vmem:[%s849] sm:$0xff]
    %v851 = vld [vmem:[%s849 + $0x8] sm:$0xff]
    %v852 = vld [vmem:[%s849 + $0x10] sm:$0xff]
    %v853 = vld [vmem:[%s849 + $0x18] sm:$0xff]
    %s854 = scalar_lea.vmem %s8, 1
    %v855 = vld [vmem:[%s854] sm:$0x1]
    %v857 = vlaneseq
    %v858 = vshrl.u32 %v857, 7
    %v859 = vsub.s32 0, %v858
    %v860 = vrot.slane %v855, %v859
    %v863 = vsel %vm316, %v848, 0
    %865 = vmatprep.subr.mxu0 0.0
    %866 = vmatpush1.msra.mxu0 %v850
    %867 = vmatprep.subr.mxu0 0.0
    %868 = vmatpush1.msra.mxu0 %v851
    %869 = vmatprep.subr.mxu0 0.0
    %870 = vmatpush1.msra.mxu0 %v852
    %871 = vmatprep.subr.mxu0 0.0
    %872 = vmatpush1.msra.mxu0 %v853
    %873 = vmatprep.subr.mxu0 0.0
    %874 = vmatpush1.msra.mxu0 0.0
    %875 = vmatprep.subr.mxu0 0.0
    %876 = vmatpush1.msra.mxu0 0.0
    %877 = vmatprep.subr.mxu0 0.0
    %878 = vmatpush1.msra.mxu0 0.0
    %879 = vmatprep.subr.mxu0 0.0
    %880 = vmatpush1.msra.mxu0 0.0
    %881 = vmatprep.subr.mxu0 0.0
    %882 = vmatpush1.msra.mxu0 0.0
    %883 = vmatprep.subr.mxu0 0.0
    %884 = vmatpush1.msra.mxu0 0.0
    %885 = vmatprep.subr.mxu0 0.0
    %886 = vmatpush1.msra.mxu0 0.0
    %887 = vmatprep.subr.mxu0 0.0
    %888 = vmatpush1.msra.mxu0 0.0
    %889 = vmatprep.subr.mxu0 0.0
    %890 = vmatpush1.msra.mxu0 0.0
    %891 = vmatprep.subr.mxu0 0.0
    %892 = vmatpush1.msra.mxu0 0.0
    %893 = vmatprep.subr.mxu0 0.0
    %894 = vmatpush1.msra.mxu0 0.0
    %895 = vmatprep.subr.mxu0 0.0
    %896 = vmatpush1.msra.mxu0 0.0
    %897 = vmatprep.subr.mxu0 0.0
    %898 = vmatpush1.msra.mxu0 0.0
    %899 = vmatprep.subr.mxu0 0.0
    %900 = vmatpush1.msra.mxu0 0.0
    %901 = vmatprep.subr.mxu0 0.0
    %902 = vmatpush1.msra.mxu0 0.0
    %903 = vmatprep.subr.mxu0 0.0
    %904 = vmatpush1.msra.mxu0 0.0
    %905 = vmatprep.subr.mxu0 0.0
    %906 = vmatpush1.msra.mxu0 0.0
    %907 = vmatprep.subr.mxu0 0.0
    %908 = vmatpush1.msra.mxu0 0.0
    %909 = vmatprep.subr.mxu0 0.0
    %910 = vmatpush1.msra.mxu0 0.0
    %911 = vmatprep.subr.mxu0 0.0
    %912 = vmatpush1.msra.mxu0 0.0
    %913 = vmatprep.subr.mxu0 0.0
    %914 = vmatpush1.msra.mxu0 0.0
    %915 = vmatprep.subr.mxu0 0.0
    %916 = vmatpush1.msra.mxu0 0.0
    %917 = vmatprep.subr.mxu0 0.0
    %918 = vmatpush1.msra.mxu0 0.0
    %919 = vmatprep.subr.mxu0 0.0
    %920 = vmatpush1.msra.mxu0 0.0
    %921 = vmatprep.subr.mxu0 0.0
    %922 = vmatpush1.msra.mxu0 0.0
    %923 = vmatprep.subr.mxu0 0.0
    %924 = vmatpush1.msra.mxu0 0.0
    %925 = vmatprep.subr.mxu0 0.0
    %926 = vmatpush1.msra.mxu0 0.0
    %927 = vmatprep.subr.mxu0 0.0
    %928 = vmatpush1.msra.mxu0 0.0
    %929 = vmatprep.mubr.f32.mxu0 0.0
    %930 = vmatmul.mubr.f32.gmra.mrb[0].mxu0 %v863
    %v931 = vpop.f32.mrb[0].mxu0
    %v932 = vadd.f32 %v860, %v931
    %v933 = vpop.f32.mrb[0].mxu0
    %934 = vdwg.mxu0
    %v935 = vxor.u32 %v932, 2147483648
    %v936 = vmul.f32 %v935, 1.442695
    %v937 = vpow.pop %v936
    %v938 = vadd.f32 %v937, 1.0
    %v939 = vrcp.pop %v938
    %v940 = vmul.f32 1.0, %v939
    %v941 = vmul.f32 %v932, %v940
    %s942 = scalar_lea.vmem [#allocation13], 32
    %v943 = vld [vmem:[%s942] sm:$0xff]
    %v944 = vld [vmem:[%s942 + $0x8] sm:$0xff]
    %v945 = vld [vmem:[%s942 + $0x10] sm:$0xff]
    %v946 = vld [vmem:[%s942 + $0x18] sm:$0xff]
    %s947 = scalar_lea.vmem %s10, 1
    %v948 = vld [vmem:[%s947] sm:$0x1]
    %v950 = vlaneseq
    %v951 = vshrl.u32 %v950, 7
    %v952 = vsub.s32 0, %v951
    %v953 = vrot.slane %v948, %v952
    %v956 = vsel %vm316, %v941, 0
    %958 = vmatprep.subr.mxu0 0.0
    %959 = vmatpush1.msra.mxu0 %v943
    %960 = vmatprep.subr.mxu0 0.0
    %961 = vmatpush1.msra.mxu0 %v944
    %962 = vmatprep.subr.mxu0 0.0
    %963 = vmatpush1.msra.mxu0 %v945
    %964 = vmatprep.subr.mxu0 0.0
    %965 = vmatpush1.msra.mxu0 %v946
    %966 = vmatprep.subr.mxu0 0.0
    %967 = vmatpush1.msra.mxu0 0.0
    %968 = vmatprep.subr.mxu0 0.0
    %969 = vmatpush1.msra.mxu0 0.0
    %970 = vmatprep.subr.mxu0 0.0
    %971 = vmatpush1.msra.mxu0 0.0
    %972 = vmatprep.subr.mxu0 0.0
    %973 = vmatpush1.msra.mxu0 0.0
    %974 = vmatprep.subr.mxu0 0.0
    %975 = vmatpush1.msra.mxu0 0.0
    %976 = vmatprep.subr.mxu0 0.0
    %977 = vmatpush1.msra.mxu0 0.0
    %978 = vmatprep.subr.mxu0 0.0
    %979 = vmatpush1.msra.mxu0 0.0
    %980 = vmatprep.subr.mxu0 0.0
    %981 = vmatpush1.msra.mxu0 0.0
    %982 = vmatprep.subr.mxu0 0.0
    %983 = vmatpush1.msra.mxu0 0.0
    %984 = vmatprep.subr.mxu0 0.0
    %985 = vmatpush1.msra.mxu0 0.0
    %986 = vmatprep.subr.mxu0 0.0
    %987 = vmatpush1.msra.mxu0 0.0
    %988 = vmatprep.subr.mxu0 0.0
    %989 = vmatpush1.msra.mxu0 0.0
    %990 = vmatprep.subr.mxu0 0.0
    %991 = vmatpush1.msra.mxu0 0.0
    %992 = vmatprep.subr.mxu0 0.0
    %993 = vmatpush1.msra.mxu0 0.0
    %994 = vmatprep.subr.mxu0 0.0
    %995 = vmatpush1.msra.mxu0 0.0
    %996 = vmatprep.subr.mxu0 0.0
    %997 = vmatpush1.msra.mxu0 0.0
    %998 = vmatprep.subr.mxu0 0.0
    %999 = vmatpush1.msra.mxu0 0.0
    %1000 = vmatprep.subr.mxu0 0.0
    %1001 = vmatpush1.msra.mxu0 0.0
    %1002 = vmatprep.subr.mxu0 0.0
    %1003 = vmatpush1.msra.mxu0 0.0
    %1004 = vmatprep.subr.mxu0 0.0
    %1005 = vmatpush1.msra.mxu0 0.0
    %1006 = vmatprep.subr.mxu0 0.0
    %1007 = vmatpush1.msra.mxu0 0.0
    %1008 = vmatprep.subr.mxu0 0.0
    %1009 = vmatpush1.msra.mxu0 0.0
    %1010 = vmatprep.subr.mxu0 0.0
    %1011 = vmatpush1.msra.mxu0 0.0
    %1012 = vmatprep.subr.mxu0 0.0
    %1013 = vmatpush1.msra.mxu0 0.0
    %1014 = vmatprep.subr.mxu0 0.0
    %1015 = vmatpush1.msra.mxu0 0.0
    %1016 = vmatprep.subr.mxu0 0.0
    %1017 = vmatpush1.msra.mxu0 0.0
    %1018 = vmatprep.subr.mxu0 0.0
    %1019 = vmatpush1.msra.mxu0 0.0
    %1020 = vmatprep.subr.mxu0 0.0
    %1021 = vmatpush1.msra.mxu0 0.0
    %1022 = vmatprep.mubr.f32.mxu0 0.0
    %1023 = vmatmul.mubr.f32.gmra.mrb[0].mxu0 %v956
    %v1024 = vpop.f32.mrb[0].mxu0
    %v1025 = vadd.f32 %v953, %v1024
    %v1026 = vpop.f32.mrb[0].mxu0
    %1027 = vdwg.mxu0
    %v1028 = vxor.u32 %v1025, 2147483648
    %v1029 = vmul.f32 %v1028, 1.442695
    %v1030 = vpow.pop %v1029
    %v1031 = vadd.f32 %v1030, 1.0
    %v1032 = vrcp.pop %v1031
    %v1033 = vmul.f32 1.0, %v1032
    %v1034 = vmul.f32 %v1033, 4.0
    %v1035 = vadd.f32 %v1034, -5.0
    %v1036 = vmul.f32 %v1035, 1.442695
    %v1037 = vpow.pop %v1036
    %v1038 = vsel %vm136, %v1037, %v1025
    %s1039 = scalar_lea.vmem [#allocation14], 8
    %1040 = vst.msk [vmem:[%s1039] sm:$0xff] %vm316, %v1038
    %s1041 = scalar_lea.vmem [#allocation2], 16
    %v1042 = vld [vmem:[%s1041] sm:$0xff]
    %s1043 = scalar_lea.vmem [#allocation5], 16
    %v1044 = vld [vmem:[%s1043] sm:$0xff]
    %s1045 = scalar_lea.vmem [#allocation7], 32
    %v1046 = vld [vmem:[%s1045] sm:$0xff]
    %v1047 = vld [vmem:[%s1045 + $0x8] sm:$0xff]
    %s1048 = scalar_lea.vmem [#allocation8], 32
    %v1049 = vld [vmem:[%s1048] sm:$0xff]
    %v1050 = vld [vmem:[%s1048 + $0x8] sm:$0xff]
    %v1052 = vsel %vm143, %v1044, 0
    %1054 = vmatprep.subr.mxu0 0.0
    %1055 = vmatpush1.msra.mxu0 %v1049
    %1056 = vmatprep.subr.mxu0 0.0
    %1057 = vmatpush1.msra.mxu0 %v1050
    %1058 = vmatprep.subr.mxu0 0.0
    %1059 = vmatpush1.msra.mxu0 0.0
    %1060 = vmatprep.subr.mxu0 0.0
    %1061 = vmatpush1.msra.mxu0 0.0
    %1062 = vmatprep.subr.mxu0 0.0
    %1063 = vmatpush1.msra.mxu0 0.0
    %1064 = vmatprep.subr.mxu0 0.0
    %1065 = vmatpush1.msra.mxu0 0.0
    %1066 = vmatprep.subr.mxu0 0.0
    %1067 = vmatpush1.msra.mxu0 0.0
    %1068 = vmatprep.subr.mxu0 0.0
    %1069 = vmatpush1.msra.mxu0 0.0
    %1070 = vmatprep.subr.mxu0 0.0
    %1071 = vmatpush1.msra.mxu0 0.0
    %1072 = vmatprep.subr.mxu0 0.0
    %1073 = vmatpush1.msra.mxu0 0.0
    %1074 = vmatprep.subr.mxu0 0.0
    %1075 = vmatpush1.msra.mxu0 0.0
    %1076 = vmatprep.subr.mxu0 0.0
    %1077 = vmatpush1.msra.mxu0 0.0
    %1078 = vmatprep.subr.mxu0 0.0
    %1079 = vmatpush1.msra.mxu0 0.0
    %1080 = vmatprep.subr.mxu0 0.0
    %1081 = vmatpush1.msra.mxu0 0.0
    %1082 = vmatprep.subr.mxu0 0.0
    %1083 = vmatpush1.msra.mxu0 0.0
    %1084 = vmatprep.subr.mxu0 0.0
    %1085 = vmatpush1.msra.mxu0 0.0
    %1086 = vmatprep.subr.mxu0 0.0
    %1087 = vmatpush1.msra.mxu0 0.0
    %1088 = vmatprep.subr.mxu0 0.0
    %1089 = vmatpush1.msra.mxu0 0.0
    %1090 = vmatprep.subr.mxu0 0.0
    %1091 = vmatpush1.msra.mxu0 0.0
    %1092 = vmatprep.subr.mxu0 0.0
    %1093 = vmatpush1.msra.mxu0 0.0
    %1094 = vmatprep.subr.mxu0 0.0
    %1095 = vmatpush1.msra.mxu0 0.0
    %1096 = vmatprep.subr.mxu0 0.0
    %1097 = vmatpush1.msra.mxu0 0.0
    %1098 = vmatprep.subr.mxu0 0.0
    %1099 = vmatpush1.msra.mxu0 0.0
    %1100 = vmatprep.subr.mxu0 0.0
    %1101 = vmatpush1.msra.mxu0 0.0
    %1102 = vmatprep.subr.mxu0 0.0
    %1103 = vmatpush1.msra.mxu0 0.0
    %1104 = vmatprep.subr.mxu0 0.0
    %1105 = vmatpush1.msra.mxu0 0.0
    %1106 = vmatprep.subr.mxu0 0.0
    %1107 = vmatpush1.msra.mxu0 0.0
    %1108 = vmatprep.subr.mxu0 0.0
    %1109 = vmatpush1.msra.mxu0 0.0
    %1110 = vmatprep.subr.mxu0 0.0
    %1111 = vmatpush1.msra.mxu0 0.0
    %1112 = vmatprep.subr.mxu0 0.0
    %1113 = vmatpush1.msra.mxu0 0.0
    %1114 = vmatprep.subr.mxu0 0.0
    %1115 = vmatpush1.msra.mxu0 0.0
    %1116 = vmatprep.subr.mxu0 0.0
    %1117 = vmatpush1.msra.mxu0 0.0
    %1118 = vmatprep.mubr.f32.mxu0 0.0
    %1119 = vmatmul.mubr.f32.gmra.mrb[0].mxu0 %v1052
    %v1120 = vpop.f32.mrb[0].mxu0
    %v1121 = vadd.f32 0.0, %v1120
    %v1122 = vpop.f32.mrb[0].mxu0
    %1123 = vdwg.mxu0
    %v1125 = vsel %vm143, %v1042, 0
    %1127 = vmatprep.subr.mxu0 0.0
    %1128 = vmatpush1.msra.mxu0 %v1046
    %1129 = vmatprep.subr.mxu0 0.0
    %1130 = vmatpush1.msra.mxu0 %v1047
    %1131 = vmatprep.subr.mxu0 0.0
    %1132 = vmatpush1.msra.mxu0 0.0
    %1133 = vmatprep.subr.mxu0 0.0
    %1134 = vmatpush1.msra.mxu0 0.0
    %1135 = vmatprep.subr.mxu0 0.0
    %1136 = vmatpush1.msra.mxu0 0.0
    %1137 = vmatprep.subr.mxu0 0.0
    %1138 = vmatpush1.msra.mxu0 0.0
    %1139 = vmatprep.subr.mxu0 0.0
    %1140 = vmatpush1.msra.mxu0 0.0
    %1141 = vmatprep.subr.mxu0 0.0
    %1142 = vmatpush1.msra.mxu0 0.0
    %1143 = vmatprep.subr.mxu0 0.0
    %1144 = vmatpush1.msra.mxu0 0.0
    %1145 = vmatprep.subr.mxu0 0.0
    %1146 = vmatpush1.msra.mxu0 0.0
    %1147 = vmatprep.subr.mxu0 0.0
    %1148 = vmatpush1.msra.mxu0 0.0
    %1149 = vmatprep.subr.mxu0 0.0
    %1150 = vmatpush1.msra.mxu0 0.0
    %1151 = vmatprep.subr.mxu0 0.0
    %1152 = vmatpush1.msra.mxu0 0.0
    %1153 = vmatprep.subr.mxu0 0.0
    %1154 = vmatpush1.msra.mxu0 0.0
    %1155 = vmatprep.subr.mxu0 0.0
    %1156 = vmatpush1.msra.mxu0 0.0
    %1157 = vmatprep.subr.mxu0 0.0
    %1158 = vmatpush1.msra.mxu0 0.0
    %1159 = vmatprep.subr.mxu0 0.0
    %1160 = vmatpush1.msra.mxu0 0.0
    %1161 = vmatprep.subr.mxu0 0.0
    %1162 = vmatpush1.msra.mxu0 0.0
    %1163 = vmatprep.subr.mxu0 0.0
    %1164 = vmatpush1.msra.mxu0 0.0
    %1165 = vmatprep.subr.mxu0 0.0
    %1166 = vmatpush1.msra.mxu0 0.0
    %1167 = vmatprep.subr.mxu0 0.0
    %1168 = vmatpush1.msra.mxu0 0.0
    %1169 = vmatprep.subr.mxu0 0.0
    %1170 = vmatpush1.msra.mxu0 0.0
    %1171 = vmatprep.subr.mxu0 0.0
    %1172 = vmatpush1.msra.mxu0 0.0
    %1173 = vmatprep.subr.mxu0 0.0
    %1174 = vmatpush1.msra.mxu0 0.0
    %1175 = vmatprep.subr.mxu0 0.0
    %1176 = vmatpush1.msra.mxu0 0.0
    %1177 = vmatprep.subr.mxu0 0.0
    %1178 = vmatpush1.msra.mxu0 0.0
    %1179 = vmatprep.subr.mxu0 0.0
    %1180 = vmatpush1.msra.mxu0 0.0
    %1181 = vmatprep.subr.mxu0 0.0
    %1182 = vmatpush1.msra.mxu0 0.0
    %1183 = vmatprep.subr.mxu0 0.0
    %1184 = vmatpush1.msra.mxu0 0.0
    %1185 = vmatprep.subr.mxu0 0.0
    %1186 = vmatpush1.msra.mxu0 0.0
    %1187 = vmatprep.subr.mxu0 0.0
    %1188 = vmatpush1.msra.mxu0 0.0
    %1189 = vmatprep.subr.mxu0 0.0
    %1190 = vmatpush1.msra.mxu0 0.0
    %1191 = vmatprep.mubr.f32.mxu0 0.0
    %1192 = vmatmul.mubr.f32.gmra.mrb[0].mxu0 %v1125
    %v1193 = vpop.f32.mrb[0].mxu0
    %v1194 = vadd.f32 %v1121, %v1193
    %v1195 = vpop.f32.mrb[0].mxu0
    %1196 = vdwg.mxu0
    %s1197 = scalar_lea.vmem %s4, 2
    %v1198 = vld [vmem:[%s1197] sm:$0x1]
    %v1200 = vlaneseq
    %v1201 = vshrl.u32 %v1200, 7
    %v1202 = vsub.s32 0, %v1201
    %v1203 = vrot.slane %v1198, %v1202
    %v1205 = vadd.f32 %v1194, %v1203
    %v1206 = vxor.u32 %v1205, 2147483648
    %v1207 = vmul.f32 %v1206, 1.442695
    %v1208 = vpow.pop %v1207
    %v1209 = vadd.f32 %v1208, 1.0
    %v1210 = vrcp.pop %v1209
    %v1211 = vmul.f32 1.0, %v1210
    %v1212 = vmul.f32 %v1205, %v1211
    %s1213 = scalar_lea.vmem [#allocation10], 64
    %v1214 = vld [vmem:[%s1213] sm:$0xff]
    %v1215 = vld [vmem:[%s1213 + $0x8] sm:$0xff]
    %v1216 = vld [vmem:[%s1213 + $0x10] sm:$0xff]
    %v1217 = vld [vmem:[%s1213 + $0x18] sm:$0xff]
    %s1218 = scalar_lea.vmem %s6, 2
    %v1219 = vld [vmem:[%s1218] sm:$0x1]
    %v1221 = vlaneseq
    %v1222 = vshrl.u32 %v1221, 7
    %v1223 = vsub.s32 0, %v1222
    %v1224 = vrot.slane %v1219, %v1223
    %v1227 = vsel %vm316, %v1212, 0
    %1229 = vmatprep.subr.mxu0 0.0
    %1230 = vmatpush1.msra.mxu0 %v1214
    %1231 = vmatprep.subr.mxu0 0.0
    %1232 = vmatpush1.msra.mxu0 %v1215
    %1233 = vmatprep.subr.mxu0 0.0
    %1234 = vmatpush1.msra.mxu0 %v1216
    %1235 = vmatprep.subr.mxu0 0.0
    %1236 = vmatpush1.msra.mxu0 %v1217
    %1237 = vmatprep.subr.mxu0 0.0
    %1238 = vmatpush1.msra.mxu0 0.0
    %1239 = vmatprep.subr.mxu0 0.0
    %1240 = vmatpush1.msra.mxu0 0.0
    %1241 = vmatprep.subr.mxu0 0.0
    %1242 = vmatpush1.msra.mxu0 0.0
    %1243 = vmatprep.subr.mxu0 0.0
    %1244 = vmatpush1.msra.mxu0 0.0
    %1245 = vmatprep.subr.mxu0 0.0
    %1246 = vmatpush1.msra.mxu0 0.0
    %1247 = vmatprep.subr.mxu0 0.0
    %1248 = vmatpush1.msra.mxu0 0.0
    %1249 = vmatprep.subr.mxu0 0.0
    %1250 = vmatpush1.msra.mxu0 0.0
    %1251 = vmatprep.subr.mxu0 0.0
    %1252 = vmatpush1.msra.mxu0 0.0
    %1253 = vmatprep.subr.mxu0 0.0
    %1254 = vmatpush1.msra.mxu0 0.0
    %1255 = vmatprep.subr.mxu0 0.0
    %1256 = vmatpush1.msra.mxu0 0.0
    %1257 = vmatprep.subr.mxu0 0.0
    %1258 = vmatpush1.msra.mxu0 0.0
    %1259 = vmatprep.subr.mxu0 0.0
    %1260 = vmatpush1.msra.mxu0 0.0
    %1261 = vmatprep.subr.mxu0 0.0
    %1262 = vmatpush1.msra.mxu0 0.0
    %1263 = vmatprep.subr.mxu0 0.0
    %1264 = vmatpush1.msra.mxu0 0.0
    %1265 = vmatprep.subr.mxu0 0.0
    %1266 = vmatpush1.msra.mxu0 0.0
    %1267 = vmatprep.subr.mxu0 0.0
    %1268 = vmatpush1.msra.mxu0 0.0
    %1269 = vmatprep.subr.mxu0 0.0
    %1270 = vmatpush1.msra.mxu0 0.0
    %1271 = vmatprep.subr.mxu0 0.0
    %1272 = vmatpush1.msra.mxu0 0.0
    %1273 = vmatprep.subr.mxu0 0.0
    %1274 = vmatpush1.msra.mxu0 0.0
    %1275 = vmatprep.subr.mxu0 0.0
    %1276 = vmatpush1.msra.mxu0 0.0
    %1277 = vmatprep.subr.mxu0 0.0
    %1278 = vmatpush1.msra.mxu0 0.0
    %1279 = vmatprep.subr.mxu0 0.0
    %1280 = vmatpush1.msra.mxu0 0.0
    %1281 = vmatprep.subr.mxu0 0.0
    %1282 = vmatpush1.msra.mxu0 0.0
    %1283 = vmatprep.subr.mxu0 0.0
    %1284 = vmatpush1.msra.mxu0 0.0
    %1285 = vmatprep.subr.mxu0 0.0
    %1286 = vmatpush1.msra.mxu0 0.0
    %1287 = vmatprep.subr.mxu0 0.0
    %1288 = vmatpush1.msra.mxu0 0.0
    %1289 = vmatprep.subr.mxu0 0.0
    %1290 = vmatpush1.msra.mxu0 0.0
    %1291 = vmatprep.subr.mxu0 0.0
    %1292 = vmatpush1.msra.mxu0 0.0
    %1293 = vmatprep.mubr.f32.mxu0 0.0
    %1294 = vmatmul.mubr.f32.gmra.mrb[0].mxu0 %v1227
    %v1295 = vpop.f32.mrb[0].mxu0
    %v1296 = vadd.f32 %v1224, %v1295
    %v1297 = vpop.f32.mrb[0].mxu0
    %1298 = vdwg.mxu0
    %v1299 = vxor.u32 %v1296, 2147483648
    %v1300 = vmul.f32 %v1299, 1.442695
    %v1301 = vpow.pop %v1300
    %v1302 = vadd.f32 %v1301, 1.0
    %v1303 = vrcp.pop %v1302
    %v1304 = vmul.f32 1.0, %v1303
    %v1305 = vmul.f32 %v1296, %v1304
    %s1306 = scalar_lea.vmem [#allocation11], 64
    %v1307 = vld [vmem:[%s1306] sm:$0xff]
    %v1308 = vld [vmem:[%s1306 + $0x8] sm:$0xff]
    %v1309 = vld [vmem:[%s1306 + $0x10] sm:$0xff]
    %v1310 = vld [vmem:[%s1306 + $0x18] sm:$0xff]
    %s1311 = scalar_lea.vmem %s8, 2
    %v1312 = vld [vmem:[%s1311] sm:$0x1]
    %v1314 = vlaneseq
    %v1315 = vshrl.u32 %v1314, 7
    %v1316 = vsub.s32 0, %v1315
    %v1317 = vrot.slane %v1312, %v1316
    %v1320 = vsel %vm316, %v1305, 0
    %1322 = vmatprep.subr.mxu0 0.0
    %1323 = vmatpush1.msra.mxu0 %v1307
    %1324 = vmatprep.subr.mxu0 0.0
    %1325 = vmatpush1.msra.mxu0 %v1308
    %1326 = vmatprep.subr.mxu0 0.0
    %1327 = vmatpush1.msra.mxu0 %v1309
    %1328 = vmatprep.subr.mxu0 0.0
    %1329 = vmatpush1.msra.mxu0 %v1310
    %1330 = vmatprep.subr.mxu0 0.0
    %1331 = vmatpush1.msra.mxu0 0.0
    %1332 = vmatprep.subr.mxu0 0.0
    %1333 = vmatpush1.msra.mxu0 0.0
    %1334 = vmatprep.subr.mxu0 0.0
    %1335 = vmatpush1.msra.mxu0 0.0
    %1336 = vmatprep.subr.mxu0 0.0
    %1337 = vmatpush1.msra.mxu0 0.0
    %1338 = vmatprep.subr.mxu0 0.0
    %1339 = vmatpush1.msra.mxu0 0.0
    %1340 = vmatprep.subr.mxu0 0.0
    %1341 = vmatpush1.msra.mxu0 0.0
    %1342 = vmatprep.subr.mxu0 0.0
    %1343 = vmatpush1.msra.mxu0 0.0
    %1344 = vmatprep.subr.mxu0 0.0
    %1345 = vmatpush1.msra.mxu0 0.0
    %1346 = vmatprep.subr.mxu0 0.0
    %1347 = vmatpush1.msra.mxu0 0.0
    %1348 = vmatprep.subr.mxu0 0.0
    %1349 = vmatpush1.msra.mxu0 0.0
    %1350 = vmatprep.subr.mxu0 0.0
    %1351 = vmatpush1.msra.mxu0 0.0
    %1352 = vmatprep.subr.mxu0 0.0
    %1353 = vmatpush1.msra.mxu0 0.0
    %1354 = vmatprep.subr.mxu0 0.0
    %1355 = vmatpush1.msra.mxu0 0.0
    %1356 = vmatprep.subr.mxu0 0.0
    %1357 = vmatpush1.msra.mxu0 0.0
    %1358 = vmatprep.subr.mxu0 0.0
    %1359 = vmatpush1.msra.mxu0 0.0
    %1360 = vmatprep.subr.mxu0 0.0
    %1361 = vmatpush1.msra.mxu0 0.0
    %1362 = vmatprep.subr.mxu0 0.0
    %1363 = vmatpush1.msra.mxu0 0.0
    %1364 = vmatprep.subr.mxu0 0.0
    %1365 = vmatpush1.msra.mxu0 0.0
    %1366 = vmatprep.subr.mxu0 0.0
    %1367 = vmatpush1.msra.mxu0 0.0
    %1368 = vmatprep.subr.mxu0 0.0
    %1369 = vmatpush1.msra.mxu0 0.0
    %1370 = vmatprep.subr.mxu0 0.0
    %1371 = vmatpush1.msra.mxu0 0.0
    %1372 = vmatprep.subr.mxu0 0.0
    %1373 = vmatpush1.msra.mxu0 0.0
    %1374 = vmatprep.subr.mxu0 0.0
    %1375 = vmatpush1.msra.mxu0 0.0
    %1376 = vmatprep.subr.mxu0 0.0
    %1377 = vmatpush1.msra.mxu0 0.0
    %1378 = vmatprep.subr.mxu0 0.0
    %1379 = vmatpush1.msra.mxu0 0.0
    %1380 = vmatprep.subr.mxu0 0.0
    %1381 = vmatpush1.msra.mxu0 0.0
    %1382 = vmatprep.subr.mxu0 0.0
    %1383 = vmatpush1.msra.mxu0 0.0
    %1384 = vmatprep.subr.mxu0 0.0
    %1385 = vmatpush1.msra.mxu0 0.0
    %1386 = vmatprep.mubr.f32.mxu0 0.0
    %1387 = vmatmul.mubr.f32.gmra.mrb[0].mxu0 %v1320
    %v1388 = vpop.f32.mrb[0].mxu0
    %v1389 = vadd.f32 %v1317, %v1388
    %v1390 = vpop.f32.mrb[0].mxu0
    %1391 = vdwg.mxu0
    %v1392 = vxor.u32 %v1389, 2147483648
    %v1393 = vmul.f32 %v1392, 1.442695
    %v1394 = vpow.pop %v1393
    %v1395 = vadd.f32 %v1394, 1.0
    %v1396 = vrcp.pop %v1395
    %v1397 = vmul.f32 1.0, %v1396
    %v1398 = vmul.f32 %v1389, %v1397
    %s1399 = scalar_lea.vmem [#allocation13], 64
    %v1400 = vld [vmem:[%s1399] sm:$0xff]
    %v1401 = vld [vmem:[%s1399 + $0x8] sm:$0xff]
    %v1402 = vld [vmem:[%s1399 + $0x10] sm:$0xff]
    %v1403 = vld [vmem:[%s1399 + $0x18] sm:$0xff]
    %s1404 = scalar_lea.vmem %s10, 2
    %v1405 = vld [vmem:[%s1404] sm:$0x1]
    %v1407 = vlaneseq
    %v1408 = vshrl.u32 %v1407, 7
    %v1409 = vsub.s32 0, %v1408
    %v1410 = vrot.slane %v1405, %v1409
    %v1413 = vsel %vm316, %v1398, 0
    %1415 = vmatprep.subr.mxu0 0.0
    %1416 = vmatpush1.msra.mxu0 %v1400
    %1417 = vmatprep.subr.mxu0 0.0
    %1418 = vmatpush1.msra.mxu0 %v1401
    %1419 = vmatprep.subr.mxu0 0.0
    %1420 = vmatpush1.msra.mxu0 %v1402
    %1421 = vmatprep.subr.mxu0 0.0
    %1422 = vmatpush1.msra.mxu0 %v1403
    %1423 = vmatprep.subr.mxu0 0.0
    %1424 = vmatpush1.msra.mxu0 0.0
    %1425 = vmatprep.subr.mxu0 0.0
    %1426 = vmatpush1.msra.mxu0 0.0
    %1427 = vmatprep.subr.mxu0 0.0
    %1428 = vmatpush1.msra.mxu0 0.0
    %1429 = vmatprep.subr.mxu0 0.0
    %1430 = vmatpush1.msra.mxu0 0.0
    %1431 = vmatprep.subr.mxu0 0.0
    %1432 = vmatpush1.msra.mxu0 0.0
    %1433 = vmatprep.subr.mxu0 0.0
    %1434 = vmatpush1.msra.mxu0 0.0
    %1435 = vmatprep.subr.mxu0 0.0
    %1436 = vmatpush1.msra.mxu0 0.0
    %1437 = vmatprep.subr.mxu0 0.0
    %1438 = vmatpush1.msra.mxu0 0.0
    %1439 = vmatprep.subr.mxu0 0.0
    %1440 = vmatpush1.msra.mxu0 0.0
    %1441 = vmatprep.subr.mxu0 0.0
    %1442 = vmatpush1.msra.mxu0 0.0
    %1443 = vmatprep.subr.mxu0 0.0
    %1444 = vmatpush1.msra.mxu0 0.0
    %1445 = vmatprep.subr.mxu0 0.0
    %1446 = vmatpush1.msra.mxu0 0.0
    %1447 = vmatprep.subr.mxu0 0.0
    %1448 = vmatpush1.msra.mxu0 0.0
    %1449 = vmatprep.subr.mxu0 0.0
    %1450 = vmatpush1.msra.mxu0 0.0
    %1451 = vmatprep.subr.mxu0 0.0
    %1452 = vmatpush1.msra.mxu0 0.0
    %1453 = vmatprep.subr.mxu0 0.0
    %1454 = vmatpush1.msra.mxu0 0.0
    %1455 = vmatprep.subr.mxu0 0.0
    %1456 = vmatpush1.msra.mxu0 0.0
    %1457 = vmatprep.subr.mxu0 0.0
    %1458 = vmatpush1.msra.mxu0 0.0
    %1459 = vmatprep.subr.mxu0 0.0
    %1460 = vmatpush1.msra.mxu0 0.0
    %1461 = vmatprep.subr.mxu0 0.0
    %1462 = vmatpush1.msra.mxu0 0.0
    %1463 = vmatprep.subr.mxu0 0.0
    %1464 = vmatpush1.msra.mxu0 0.0
    %1465 = vmatprep.subr.mxu0 0.0
    %1466 = vmatpush1.msra.mxu0 0.0
    %1467 = vmatprep.subr.mxu0 0.0
    %1468 = vmatpush1.msra.mxu0 0.0
    %1469 = vmatprep.subr.mxu0 0.0
    %1470 = vmatpush1.msra.mxu0 0.0
    %1471 = vmatprep.subr.mxu0 0.0
    %1472 = vmatpush1.msra.mxu0 0.0
    %1473 = vmatprep.subr.mxu0 0.0
    %1474 = vmatpush1.msra.mxu0 0.0
    %1475 = vmatprep.subr.mxu0 0.0
    %1476 = vmatpush1.msra.mxu0 0.0
    %1477 = vmatprep.subr.mxu0 0.0
    %1478 = vmatpush1.msra.mxu0 0.0
    %1479 = vmatprep.mubr.f32.mxu0 0.0
    %1480 = vmatmul.mubr.f32.gmra.mrb[0].mxu0 %v1413
    %v1481 = vpop.f32.mrb[0].mxu0
    %v1482 = vadd.f32 %v1410, %v1481
    %v1483 = vpop.f32.mrb[0].mxu0
    %1484 = vdwg.mxu0
    %v1485 = vxor.u32 %v1482, 2147483648
    %v1486 = vmul.f32 %v1485, 1.442695
    %v1487 = vpow.pop %v1486
    %v1488 = vadd.f32 %v1487, 1.0
    %v1489 = vrcp.pop %v1488
    %v1490 = vmul.f32 1.0, %v1489
    %v1491 = vmul.f32 %v1490, 4.0
    %v1492 = vadd.f32 %v1491, -5.0
    %v1493 = vmul.f32 %v1492, 1.442695
    %v1494 = vpow.pop %v1493
    %v1495 = vsel %vm136, %v1494, %v1482
    %s1496 = scalar_lea.vmem [#allocation14], 16
    %1497 = vst.msk [vmem:[%s1496] sm:$0xff] %vm316, %v1495
    %s1498 = scalar_lea.vmem [#allocation2], 24
    %v1499 = vld [vmem:[%s1498] sm:$0xff]
    %s1500 = scalar_lea.vmem [#allocation5], 24
    %v1501 = vld [vmem:[%s1500] sm:$0xff]
    %s1502 = scalar_lea.vmem [#allocation7], 48
    %v1503 = vld [vmem:[%s1502] sm:$0xff]
    %v1504 = vld [vmem:[%s1502 + $0x8] sm:$0xff]
    %s1505 = scalar_lea.vmem [#allocation8], 48
    %v1506 = vld [vmem:[%s1505] sm:$0xff]
    %v1507 = vld [vmem:[%s1505 + $0x8] sm:$0xff]
    %v1509 = vsel %vm143, %v1501, 0
    %1511 = vmatprep.subr.mxu0 0.0
    %1512 = vmatpush1.msra.mxu0 %v1506
    %1513 = vmatprep.subr.mxu0 0.0
    %1514 = vmatpush1.msra.mxu0 %v1507
    %1515 = vmatprep.subr.mxu0 0.0
    %1516 = vmatpush1.msra.mxu0 0.0
    %1517 = vmatprep.subr.mxu0 0.0
    %1518 = vmatpush1.msra.mxu0 0.0
    %1519 = vmatprep.subr.mxu0 0.0
    %1520 = vmatpush1.msra.mxu0 0.0
    %1521 = vmatprep.subr.mxu0 0.0
    %1522 = vmatpush1.msra.mxu0 0.0
    %1523 = vmatprep.subr.mxu0 0.0
    %1524 = vmatpush1.msra.mxu0 0.0
    %1525 = vmatprep.subr.mxu0 0.0
    %1526 = vmatpush1.msra.mxu0 0.0
    %1527 = vmatprep.subr.mxu0 0.0
    %1528 = vmatpush1.msra.mxu0 0.0
    %1529 = vmatprep.subr.mxu0 0.0
    %1530 = vmatpush1.msra.mxu0 0.0
    %1531 = vmatprep.subr.mxu0 0.0
    %1532 = vmatpush1.msra.mxu0 0.0
    %1533 = vmatprep.subr.mxu0 0.0
    %1534 = vmatpush1.msra.mxu0 0.0
    %1535 = vmatprep.subr.mxu0 0.0
    %1536 = vmatpush1.msra.mxu0 0.0
    %1537 = vmatprep.subr.mxu0 0.0
    %1538 = vmatpush1.msra.mxu0 0.0
    %1539 = vmatprep.subr.mxu0 0.0
    %1540 = vmatpush1.msra.mxu0 0.0
    %1541 = vmatprep.subr.mxu0 0.0
    %1542 = vmatpush1.msra.mxu0 0.0
    %1543 = vmatprep.subr.mxu0 0.0
    %1544 = vmatpush1.msra.mxu0 0.0
    %1545 = vmatprep.subr.mxu0 0.0
    %1546 = vmatpush1.msra.mxu0 0.0
    %1547 = vmatprep.subr.mxu0 0.0
    %1548 = vmatpush1.msra.mxu0 0.0
    %1549 = vmatprep.subr.mxu0 0.0
    %1550 = vmatpush1.msra.mxu0 0.0
    %1551 = vmatprep.subr.mxu0 0.0
    %1552 = vmatpush1.msra.mxu0 0.0
    %1553 = vmatprep.subr.mxu0 0.0
    %1554 = vmatpush1.msra.mxu0 0.0
    %1555 = vmatprep.subr.mxu0 0.0
    %1556 = vmatpush1.msra.mxu0 0.0
    %1557 = vmatprep.subr.mxu0 0.0
    %1558 = vmatpush1.msra.mxu0 0.0
    %1559 = vmatprep.subr.mxu0 0.0
    %1560 = vmatpush1.msra.mxu0 0.0
    %1561 = vmatprep.subr.mxu0 0.0
    %1562 = vmatpush1.msra.mxu0 0.0
    %1563 = vmatprep.subr.mxu0 0.0
    %1564 = vmatpush1.msra.mxu0 0.0
    %1565 = vmatprep.subr.mxu0 0.0
    %1566 = vmatpush1.msra.mxu0 0.0
    %1567 = vmatprep.subr.mxu0 0.0
    %1568 = vmatpush1.msra.mxu0 0.0
    %1569 = vmatprep.subr.mxu0 0.0
    %1570 = vmatpush1.msra.mxu0 0.0
    %1571 = vmatprep.subr.mxu0 0.0
    %1572 = vmatpush1.msra.mxu0 0.0
    %1573 = vmatprep.subr.mxu0 0.0
    %1574 = vmatpush1.msra.mxu0 0.0
    %1575 = vmatprep.mubr.f32.mxu0 0.0
    %1576 = vmatmul.mubr.f32.gmra.mrb[0].mxu0 %v1509
    %v1577 = vpop.f32.mrb[0].mxu0
    %v1578 = vadd.f32 0.0, %v1577
    %v1579 = vpop.f32.mrb[0].mxu0
    %1580 = vdwg.mxu0
    %v1582 = vsel %vm143, %v1499, 0
    %1584 = vmatprep.subr.mxu0 0.0
    %1585 = vmatpush1.msra.mxu0 %v1503
    %1586 = vmatprep.subr.mxu0 0.0
    %1587 = vmatpush1.msra.mxu0 %v1504
    %1588 = vmatprep.subr.mxu0 0.0
    %1589 = vmatpush1.msra.mxu0 0.0
    %1590 = vmatprep.subr.mxu0 0.0
    %1591 = vmatpush1.msra.mxu0 0.0
    %1592 = vmatprep.subr.mxu0 0.0
    %1593 = vmatpush1.msra.mxu0 0.0
    %1594 = vmatprep.subr.mxu0 0.0
    %1595 = vmatpush1.msra.mxu0 0.0
    %1596 = vmatprep.subr.mxu0 0.0
    %1597 = vmatpush1.msra.mxu0 0.0
    %1598 = vmatprep.subr.mxu0 0.0
    %1599 = vmatpush1.msra.mxu0 0.0
    %1600 = vmatprep.subr.mxu0 0.0
    %1601 = vmatpush1.msra.mxu0 0.0
    %1602 = vmatprep.subr.mxu0 0.0
    %1603 = vmatpush1.msra.mxu0 0.0
    %1604 = vmatprep.subr.mxu0 0.0
    %1605 = vmatpush1.msra.mxu0 0.0
    %1606 = vmatprep.subr.mxu0 0.0
    %1607 = vmatpush1.msra.mxu0 0.0
    %1608 = vmatprep.subr.mxu0 0.0
    %1609 = vmatpush1.msra.mxu0 0.0
    %1610 = vmatprep.subr.mxu0 0.0
    %1611 = vmatpush1.msra.mxu0 0.0
    %1612 = vmatprep.subr.mxu0 0.0
    %1613 = vmatpush1.msra.mxu0 0.0
    %1614 = vmatprep.subr.mxu0 0.0
    %1615 = vmatpush1.msra.mxu0 0.0
    %1616 = vmatprep.subr.mxu0 0.0
    %1617 = vmatpush1.msra.mxu0 0.0
    %1618 = vmatprep.subr.mxu0 0.0
    %1619 = vmatpush1.msra.mxu0 0.0
    %1620 = vmatprep.subr.mxu0 0.0
    %1621 = vmatpush1.msra.mxu0 0.0
    %1622 = vmatprep.subr.mxu0 0.0
    %1623 = vmatpush1.msra.mxu0 0.0
    %1624 = vmatprep.subr.mxu0 0.0
    %1625 = vmatpush1.msra.mxu0 0.0
    %1626 = vmatprep.subr.mxu0 0.0
    %1627 = vmatpush1.msra.mxu0 0.0
    %1628 = vmatprep.subr.mxu0 0.0
    %1629 = vmatpush1.msra.mxu0 0.0
    %1630 = vmatprep.subr.mxu0 0.0
    %1631 = vmatpush1.msra.mxu0 0.0
    %1632 = vmatprep.subr.mxu0 0.0
    %1633 = vmatpush1.msra.mxu0 0.0
    %1634 = vmatprep.subr.mxu0 0.0
    %1635 = vmatpush1.msra.mxu0 0.0
    %1636 = vmatprep.subr.mxu0 0.0
    %1637 = vmatpush1.msra.mxu0 0.0
    %1638 = vmatprep.subr.mxu0 0.0
    %1639 = vmatpush1.msra.mxu0 0.0
    %1640 = vmatprep.subr.mxu0 0.0
    %1641 = vmatpush1.msra.mxu0 0.0
    %1642 = vmatprep.subr.mxu0 0.0
    %1643 = vmatpush1.msra.mxu0 0.0
    %1644 = vmatprep.subr.mxu0 0.0
    %1645 = vmatpush1.msra.mxu0 0.0
    %1646 = vmatprep.subr.mxu0 0.0
    %1647 = vmatpush1.msra.mxu0 0.0
    %1648 = vmatprep.mubr.f32.mxu0 0.0
    %1649 = vmatmul.mubr.f32.gmra.mrb[0].mxu0 %v1582
    %v1650 = vpop.f32.mrb[0].mxu0
    %v1651 = vadd.f32 %v1578, %v1650
    %v1652 = vpop.f32.mrb[0].mxu0
    %1653 = vdwg.mxu0
    %s1654 = scalar_lea.vmem %s4, 3
    %v1655 = vld [vmem:[%s1654] sm:$0x1]
    %v1657 = vlaneseq
    %v1658 = vshrl.u32 %v1657, 7
    %v1659 = vsub.s32 0, %v1658
    %v1660 = vrot.slane %v1655, %v1659
    %v1662 = vadd.f32 %v1651, %v1660
    %v1663 = vxor.u32 %v1662, 2147483648
    %v1664 = vmul.f32 %v1663, 1.442695
    %v1665 = vpow.pop %v1664
    %v1666 = vadd.f32 %v1665, 1.0
    %v1667 = vrcp.pop %v1666
    %v1668 = vmul.f32 1.0, %v1667
    %v1669 = vmul.f32 %v1662, %v1668
    %s1670 = scalar_lea.vmem [#allocation10], 96
    %v1671 = vld [vmem:[%s1670] sm:$0xff]
    %v1672 = vld [vmem:[%s1670 + $0x8] sm:$0xff]
    %v1673 = vld [vmem:[%s1670 + $0x10] sm:$0xff]
    %v1674 = vld [vmem:[%s1670 + $0x18] sm:$0xff]
    %s1675 = scalar_lea.vmem %s6, 3
    %v1676 = vld [vmem:[%s1675] sm:$0x1]
    %v1678 = vlaneseq
    %v1679 = vshrl.u32 %v1678, 7
    %v1680 = vsub.s32 0, %v1679
    %v1681 = vrot.slane %v1676, %v1680
    %v1684 = vsel %vm316, %v1669, 0
    %1686 = vmatprep.subr.mxu0 0.0
    %1687 = vmatpush1.msra.mxu0 %v1671
    %1688 = vmatprep.subr.mxu0 0.0
    %1689 = vmatpush1.msra.mxu0 %v1672
    %1690 = vmatprep.subr.mxu0 0.0
    %1691 = vmatpush1.msra.mxu0 %v1673
    %1692 = vmatprep.subr.mxu0 0.0
    %1693 = vmatpush1.msra.mxu0 %v1674
    %1694 = vmatprep.subr.mxu0 0.0
    %1695 = vmatpush1.msra.mxu0 0.0
    %1696 = vmatprep.subr.mxu0 0.0
    %1697 = vmatpush1.msra.mxu0 0.0
    %1698 = vmatprep.subr.mxu0 0.0
    %1699 = vmatpush1.msra.mxu0 0.0
    %1700 = vmatprep.subr.mxu0 0.0
    %1701 = vmatpush1.msra.mxu0 0.0
    %1702 = vmatprep.subr.mxu0 0.0
    %1703 = vmatpush1.msra.mxu0 0.0
    %1704 = vmatprep.subr.mxu0 0.0
    %1705 = vmatpush1.msra.mxu0 0.0
    %1706 = vmatprep.subr.mxu0 0.0
    %1707 = vmatpush1.msra.mxu0 0.0
    %1708 = vmatprep.subr.mxu0 0.0
    %1709 = vmatpush1.msra.mxu0 0.0
    %1710 = vmatprep.subr.mxu0 0.0
    %1711 = vmatpush1.msra.mxu0 0.0
    %1712 = vmatprep.subr.mxu0 0.0
    %1713 = vmatpush1.msra.mxu0 0.0
    %1714 = vmatprep.subr.mxu0 0.0
    %1715 = vmatpush1.msra.mxu0 0.0
    %1716 = vmatprep.subr.mxu0 0.0
    %1717 = vmatpush1.msra.mxu0 0.0
    %1718 = vmatprep.subr.mxu0 0.0
    %1719 = vmatpush1.msra.mxu0 0.0
    %1720 = vmatprep.subr.mxu0 0.0
    %1721 = vmatpush1.msra.mxu0 0.0
    %1722 = vmatprep.subr.mxu0 0.0
    %1723 = vmatpush1.msra.mxu0 0.0
    %1724 = vmatprep.subr.mxu0 0.0
    %1725 = vmatpush1.msra.mxu0 0.0
    %1726 = vmatprep.subr.mxu0 0.0
    %1727 = vmatpush1.msra.mxu0 0.0
    %1728 = vmatprep.subr.mxu0 0.0
    %1729 = vmatpush1.msra.mxu0 0.0
    %1730 = vmatprep.subr.mxu0 0.0
    %1731 = vmatpush1.msra.mxu0 0.0
    %1732 = vmatprep.subr.mxu0 0.0
    %1733 = vmatpush1.msra.mxu0 0.0
    %1734 = vmatprep.subr.mxu0 0.0
    %1735 = vmatpush1.msra.mxu0 0.0
    %1736 = vmatprep.subr.mxu0 0.0
    %1737 = vmatpush1.msra.mxu0 0.0
    %1738 = vmatprep.subr.mxu0 0.0
    %1739 = vmatpush1.msra.mxu0 0.0
    %1740 = vmatprep.subr.mxu0 0.0
    %1741 = vmatpush1.msra.mxu0 0.0
    %1742 = vmatprep.subr.mxu0 0.0
    %1743 = vmatpush1.msra.mxu0 0.0
    %1744 = vmatprep.subr.mxu0 0.0
    %1745 = vmatpush1.msra.mxu0 0.0
    %1746 = vmatprep.subr.mxu0 0.0
    %1747 = vmatpush1.msra.mxu0 0.0
    %1748 = vmatprep.subr.mxu0 0.0
    %1749 = vmatpush1.msra.mxu0 0.0
    %1750 = vmatprep.mubr.f32.mxu0 0.0
    %1751 = vmatmul.mubr.f32.gmra.mrb[0].mxu0 %v1684
    %v1752 = vpop.f32.mrb[0].mxu0
    %v1753 = vadd.f32 %v1681, %v1752
    %v1754 = vpop.f32.mrb[0].mxu0
    %1755 = vdwg.mxu0
    %v1756 = vxor.u32 %v1753, 2147483648
    %v1757 = vmul.f32 %v1756, 1.442695
    %v1758 = vpow.pop %v1757
    %v1759 = vadd.f32 %v1758, 1.0
    %v1760 = vrcp.pop %v1759
    %v1761 = vmul.f32 1.0, %v1760
    %v1762 = vmul.f32 %v1753, %v1761
    %s1763 = scalar_lea.vmem [#allocation11], 96
    %v1764 = vld [vmem:[%s1763] sm:$0xff]
    %v1765 = vld [vmem:[%s1763 + $0x8] sm:$0xff]
    %v1766 = vld [vmem:[%s1763 + $0x10] sm:$0xff]
    %v1767 = vld [vmem:[%s1763 + $0x18] sm:$0xff]
    %s1768 = scalar_lea.vmem %s8, 3
    %v1769 = vld [vmem:[%s1768] sm:$0x1]
    %v1771 = vlaneseq
    %v1772 = vshrl.u32 %v1771, 7
    %v1773 = vsub.s32 0, %v1772
    %v1774 = vrot.slane %v1769, %v1773
    %v1777 = vsel %vm316, %v1762, 0
    %1779 = vmatprep.subr.mxu0 0.0
    %1780 = vmatpush1.msra.mxu0 %v1764
    %1781 = vmatprep.subr.mxu0 0.0
    %1782 = vmatpush1.msra.mxu0 %v1765
    %1783 = vmatprep.subr.mxu0 0.0
    %1784 = vmatpush1.msra.mxu0 %v1766
    %1785 = vmatprep.subr.mxu0 0.0
    %1786 = vmatpush1.msra.mxu0 %v1767
    %1787 = vmatprep.subr.mxu0 0.0
    %1788 = vmatpush1.msra.mxu0 0.0
    %1789 = vmatprep.subr.mxu0 0.0
    %1790 = vmatpush1.msra.mxu0 0.0
    %1791 = vmatprep.subr.mxu0 0.0
    %1792 = vmatpush1.msra.mxu0 0.0
    %1793 = vmatprep.subr.mxu0 0.0
    %1794 = vmatpush1.msra.mxu0 0.0
    %1795 = vmatprep.subr.mxu0 0.0
    %1796 = vmatpush1.msra.mxu0 0.0
    %1797 = vmatprep.subr.mxu0 0.0
    %1798 = vmatpush1.msra.mxu0 0.0
    %1799 = vmatprep.subr.mxu0 0.0
    %1800 = vmatpush1.msra.mxu0 0.0
    %1801 = vmatprep.subr.mxu0 0.0
    %1802 = vmatpush1.msra.mxu0 0.0
    %1803 = vmatprep.subr.mxu0 0.0
    %1804 = vmatpush1.msra.mxu0 0.0
    %1805 = vmatprep.subr.mxu0 0.0
    %1806 = vmatpush1.msra.mxu0 0.0
    %1807 = vmatprep.subr.mxu0 0.0
    %1808 = vmatpush1.msra.mxu0 0.0
    %1809 = vmatprep.subr.mxu0 0.0
    %1810 = vmatpush1.msra.mxu0 0.0
    %1811 = vmatprep.subr.mxu0 0.0
    %1812 = vmatpush1.msra.mxu0 0.0
    %1813 = vmatprep.subr.mxu0 0.0
    %1814 = vmatpush1.msra.mxu0 0.0
    %1815 = vmatprep.subr.mxu0 0.0
    %1816 = vmatpush1.msra.mxu0 0.0
    %1817 = vmatprep.subr.mxu0 0.0
    %1818 = vmatpush1.msra.mxu0 0.0
    %1819 = vmatprep.subr.mxu0 0.0
    %1820 = vmatpush1.msra.mxu0 0.0
    %1821 = vmatprep.subr.mxu0 0.0
    %1822 = vmatpush1.msra.mxu0 0.0
    %1823 = vmatprep.subr.mxu0 0.0
    %1824 = vmatpush1.msra.mxu0 0.0
    %1825 = vmatprep.subr.mxu0 0.0
    %1826 = vmatpush1.msra.mxu0 0.0
    %1827 = vmatprep.subr.mxu0 0.0
    %1828 = vmatpush1.msra.mxu0 0.0
    %1829 = vmatprep.subr.mxu0 0.0
    %1830 = vmatpush1.msra.mxu0 0.0
    %1831 = vmatprep.subr.mxu0 0.0
    %1832 = vmatpush1.msra.mxu0 0.0
    %1833 = vmatprep.subr.mxu0 0.0
    %1834 = vmatpush1.msra.mxu0 0.0
    %1835 = vmatprep.subr.mxu0 0.0
    %1836 = vmatpush1.msra.mxu0 0.0
    %1837 = vmatprep.subr.mxu0 0.0
    %1838 = vmatpush1.msra.mxu0 0.0
    %1839 = vmatprep.subr.mxu0 0.0
    %1840 = vmatpush1.msra.mxu0 0.0
    %1841 = vmatprep.subr.mxu0 0.0
    %1842 = vmatpush1.msra.mxu0 0.0
    %1843 = vmatprep.mubr.f32.mxu0 0.0
    %1844 = vmatmul.mubr.f32.gmra.mrb[0].mxu0 %v1777
    %v1845 = vpop.f32.mrb[0].mxu0
    %v1846 = vadd.f32 %v1774, %v1845
    %v1847 = vpop.f32.mrb[0].mxu0
    %1848 = vdwg.mxu0
    %v1849 = vxor.u32 %v1846, 2147483648
    %v1850 = vmul.f32 %v1849, 1.442695
    %v1851 = vpow.pop %v1850
    %v1852 = vadd.f32 %v1851, 1.0
    %v1853 = vrcp.pop %v1852
    %v1854 = vmul.f32 1.0, %v1853
    %v1855 = vmul.f32 %v1846, %v1854
    %s1856 = scalar_lea.vmem [#allocation13], 96
    %v1857 = vld [vmem:[%s1856] sm:$0xff]
    %v1858 = vld [vmem:[%s1856 + $0x8] sm:$0xff]
    %v1859 = vld [vmem:[%s1856 + $0x10] sm:$0xff]
    %v1860 = vld [vmem:[%s1856 + $0x18] sm:$0xff]
    %s1861 = scalar_lea.vmem %s10, 3
    %v1862 = vld [vmem:[%s1861] sm:$0x1]
    %v1864 = vlaneseq
    %v1865 = vshrl.u32 %v1864, 7
    %v1866 = vsub.s32 0, %v1865
    %v1867 = vrot.slane %v1862, %v1866
    %v1870 = vsel %vm316, %v1855, 0
    %1872 = vmatprep.subr.mxu0 0.0
    %1873 = vmatpush1.msra.mxu0 %v1857
    %1874 = vmatprep.subr.mxu0 0.0
    %1875 = vmatpush1.msra.mxu0 %v1858
    %1876 = vmatprep.subr.mxu0 0.0
    %1877 = vmatpush1.msra.mxu0 %v1859
    %1878 = vmatprep.subr.mxu0 0.0
    %1879 = vmatpush1.msra.mxu0 %v1860
    %1880 = vmatprep.subr.mxu0 0.0
    %1881 = vmatpush1.msra.mxu0 0.0
    %1882 = vmatprep.subr.mxu0 0.0
    %1883 = vmatpush1.msra.mxu0 0.0
    %1884 = vmatprep.subr.mxu0 0.0
    %1885 = vmatpush1.msra.mxu0 0.0
    %1886 = vmatprep.subr.mxu0 0.0
    %1887 = vmatpush1.msra.mxu0 0.0
    %1888 = vmatprep.subr.mxu0 0.0
    %1889 = vmatpush1.msra.mxu0 0.0
    %1890 = vmatprep.subr.mxu0 0.0
    %1891 = vmatpush1.msra.mxu0 0.0
    %1892 = vmatprep.subr.mxu0 0.0
    %1893 = vmatpush1.msra.mxu0 0.0
    %1894 = vmatprep.subr.mxu0 0.0
    %1895 = vmatpush1.msra.mxu0 0.0
    %1896 = vmatprep.subr.mxu0 0.0
    %1897 = vmatpush1.msra.mxu0 0.0
    %1898 = vmatprep.subr.mxu0 0.0
    %1899 = vmatpush1.msra.mxu0 0.0
    %1900 = vmatprep.subr.mxu0 0.0
    %1901 = vmatpush1.msra.mxu0 0.0
    %1902 = vmatprep.subr.mxu0 0.0
    %1903 = vmatpush1.msra.mxu0 0.0
    %1904 = vmatprep.subr.mxu0 0.0
    %1905 = vmatpush1.msra.mxu0 0.0
    %1906 = vmatprep.subr.mxu0 0.0
    %1907 = vmatpush1.msra.mxu0 0.0
    %1908 = vmatprep.subr.mxu0 0.0
    %1909 = vmatpush1.msra.mxu0 0.0
    %1910 = vmatprep.subr.mxu0 0.0
    %1911 = vmatpush1.msra.mxu0 0.0
    %1912 = vmatprep.subr.mxu0 0.0
    %1913 = vmatpush1.msra.mxu0 0.0
    %1914 = vmatprep.subr.mxu0 0.0
    %1915 = vmatpush1.msra.mxu0 0.0
    %1916 = vmatprep.subr.mxu0 0.0
    %1917 = vmatpush1.msra.mxu0 0.0
    %1918 = vmatprep.subr.mxu0 0.0
    %1919 = vmatpush1.msra.mxu0 0.0
    %1920 = vmatprep.subr.mxu0 0.0
    %1921 = vmatpush1.msra.mxu0 0.0
    %1922 = vmatprep.subr.mxu0 0.0
    %1923 = vmatpush1.msra.mxu0 0.0
    %1924 = vmatprep.subr.mxu0 0.0
    %1925 = vmatpush1.msra.mxu0 0.0
    %1926 = vmatprep.subr.mxu0 0.0
    %1927 = vmatpush1.msra.mxu0 0.0
    %1928 = vmatprep.subr.mxu0 0.0
    %1929 = vmatpush1.msra.mxu0 0.0
    %1930 = vmatprep.subr.mxu0 0.0
    %1931 = vmatpush1.msra.mxu0 0.0
    %1932 = vmatprep.subr.mxu0 0.0
    %1933 = vmatpush1.msra.mxu0 0.0
    %1934 = vmatprep.subr.mxu0 0.0
    %1935 = vmatpush1.msra.mxu0 0.0
    %1936 = vmatprep.mubr.f32.mxu0 0.0
    %1937 = vmatmul.mubr.f32.gmra.mrb[0].mxu0 %v1870
    %v1938 = vpop.f32.mrb[0].mxu0
    %v1939 = vadd.f32 %v1867, %v1938
    %v1940 = vpop.f32.mrb[0].mxu0
    %1941 = vdwg.mxu0
    %v1942 = vxor.u32 %v1939, 2147483648
    %v1943 = vmul.f32 %v1942, 1.442695
    %v1944 = vpow.pop %v1943
    %v1945 = vadd.f32 %v1944, 1.0
    %v1946 = vrcp.pop %v1945
    %v1947 = vmul.f32 1.0, %v1946
    %v1948 = vmul.f32 %v1947, 4.0
    %v1949 = vadd.f32 %v1948, -5.0
    %v1950 = vmul.f32 %v1949, 1.442695
    %v1951 = vpow.pop %v1950
    %v1952 = vsel %vm136, %v1951, %v1939
    %s1953 = scalar_lea.vmem [#allocation14], 24
    %1954 = vst.msk [vmem:[%s1953] sm:$0xff] %vm316, %v1952
    // Predicated region
    $region74: #{tpu_custom_call.1} parent=1 // pred_check
      _
    $region75: #{tpu_custom_call.1} parent=1 // pred_check_branch
      %1956 = sbr.rel (0) target = $region77
    $region76: #{tpu_custom_call.1} parent=1 // pred_region
      %s1958 = ssub.s32 512, 512
      %1959 = vsyncadd [#allocation4], %s1958
      %s1960 = sshll.u32 [#allocation14], 4
      %s1961 = int_to_ptr.vmem [resolvable:$true] %s1960
      %1966 = dma.vmem_to_hbm [thread:$0]  %s1961, 512, %s11, [#allocation4], 128, 128, 8
    $region77: #{tpu_custom_call.1} parent=1 // pred_fallthru
      _
    // Predicated region
    $region78: #{tpu_custom_call.1} parent=1 // pred_check
      _
    $region79: #{tpu_custom_call.1} parent=1 // pred_check_branch
      %1968 = sbr.rel (0) target = $region81
    $region80: #{tpu_custom_call.1} parent=1 // pred_region
      %1969 = dma.done [#allocation4], 512
    $region81: #{tpu_custom_call.1} parent=1 // pred_fallthru
      _
    %1970 = vsyncpa [#allocation3], 1
    %1971 = vsyncpa [#allocation6], 1
    %1972 = vsyncpa [#allocation9], 1
    %1973 = vsyncpa [#allocation12], 1
    %1974 = vsyncpa [#allocation4], 1

</llo_original>
